<compile_context>
chip_gen: v5e
topology: v5e:2x2
jax: 0.10.0
libtpu: 0.0.40
codegen_flags: <defaults>
</compile_context>

<pallas_src>
import functools

import jax
import jax.numpy as jnp
import numpy as np
from jax import lax
from jax.experimental import pallas as pl
from jax.experimental.pallas import tpu as pltpu

EPS = 1e-5


# ----------------------------------------------------------------------------
# In-kernel helpers
# ----------------------------------------------------------------------------
def _col_masks(W, HW):
    """Lane masks for the left/right image columns (the only taps the padded
    scratch does not already zero)."""
    w_idx = lax.broadcasted_iota(jnp.int32, (1, HW), 1) % W
    return w_idx >= 1, w_idx <= W - 2


def _write_padded(pad_ref, x, W, HW):
    """Write x (C, HW) into the centre of the flat zero-padded scratch.

    Scratch layout: [W+1 zeros | image (HW) | W+1 zeros].  With this halo every
    3x3 tap at offset off = dh*W + dw is the contiguous static slice
    pad[:, (W+1)+off : (W+1)+off+HW]; vertical out-of-bounds reads land in the
    zero halo, only horizontal wrap needs the two column masks.
    """
    Wp = W + 1
    C = x.shape[0]
    zeros = jnp.zeros((C, Wp), pad_ref.dtype)
    pad_ref[:, :Wp] = zeros
    pad_ref[:, Wp:Wp + HW] = x
    pad_ref[:, Wp + HW:] = zeros


def _conv3x3_accumulate(pad_ref, w_ref, mask_l, mask_r, W, HW):
    """3x3 conv as 9 static-slice taps -> bf16 -> small MXU dots into f32 acc."""
    Wp = W + 1
    acc = None
    for kh in range(3):
        for kw in range(3):
            k = kh * 3 + kw
            off = (kh - 1) * W + (kw - 1)
            tap = pad_ref[:, Wp + off:Wp + off + HW]          # (C, HW) f32 vld
            if kw == 0:                                       # reads w-1: mask w==0
                tap = jnp.where(mask_l, tap, 0.0)
            elif kw == 2:                                     # reads w+1: mask w==W-1
                tap = jnp.where(mask_r, tap, 0.0)
            part = jnp.dot(w_ref[k], tap.astype(jnp.bfloat16),
                           preferred_element_type=jnp.float32)
            acc = part if acc is None else acc + part
    return acc


def _channel_stats(acc):
    """Per-channel partial (sum, sumsq) over this tile's lanes -> (C, 2)."""
    s = jnp.sum(acc, axis=1, keepdims=True)
    sq = jnp.sum(acc * acc, axis=1, keepdims=True)
    return jnp.concatenate([s, sq], axis=1)


# ----------------------------------------------------------------------------
# Kernels
# ----------------------------------------------------------------------------
def conv1_kernel(x_ref, w_ref, y_ref, stats_ref, pad_ref, *, W):
    """Pass 1: conv3x3(x) + per-image BN1 partial statistics."""
    HW = x_ref.shape[1]
    _write_padded(pad_ref, x_ref[...], W, HW)
    mask_l, mask_r = _col_masks(W, HW)
    acc = _conv3x3_accumulate(pad_ref, w_ref, mask_l, mask_r, W, HW)
    y_ref[...] = acc
    stats_ref[...] = _channel_stats(acc)


def bn_relu_conv2_kernel(y1_ref, scale_ref, shift_ref, w_ref,
                         y_ref, stats_ref, pad_ref, *, W):
    """Pass 2: apply BN1 (precomputed scale/shift) + ReLU, then conv3x3 + stats."""
    HW = y1_ref.shape[1]
    y1 = jnp.maximum(y1_ref[...] * scale_ref[...] + shift_ref[...], 0.0)   # f32 VPU
    _write_padded(pad_ref, y1, W, HW)
    mask_l, mask_r = _col_masks(W, HW)
    acc = _conv3x3_accumulate(pad_ref, w_ref, mask_l, mask_r, W, HW)
    y_ref[...] = acc
    stats_ref[...] = _channel_stats(acc)


def bn_add_relu_kernel(y2_ref, x_ref, scale_ref, shift_ref, out_ref):
    """Pass 3: apply BN2 + residual add (read fresh from its own tile) + ReLU."""
    out_ref[...] = jnp.maximum(
        y2_ref[...] * scale_ref[...] + shift_ref[...] + x_ref[...], 0.0)


# ----------------------------------------------------------------------------
# Wrapper
# ----------------------------------------------------------------------------
def _bn_scale_shift(stats, gamma, beta, m_total):
    """Finalize train-mode BN from per-image partial (sum, sumsq) stats."""
    tot = jnp.sum(stats, axis=0)                                  # (C, 2)
    mean = tot[:, 0] / m_total
    var = jnp.maximum(tot[:, 1] / m_total - mean * mean, 0.0)     # clamp cancellation
    scale = gamma * lax.rsqrt(var + EPS)
    shift = beta - mean * scale
    return (scale.reshape(-1, 1).astype(jnp.float32),
            shift.reshape(-1, 1).astype(jnp.float32))


def _compiler_params(tiled_bytes, resident_bytes):
    """Size vmem_limit_bytes from the actual per-step working set."""
    need = 2 * tiled_bytes + resident_bytes        # double-buffered tiles + residents
    limit = int(min(max(2 * need, 4 << 20), 96 << 20))
    return pltpu.CompilerParams(dimension_semantics=("parallel",),
                                vmem_limit_bytes=limit)


def basic_block_forward(x_nchw, params):
    """Pallas BasicBlock forward. x_nchw: (N, C, H, W) float32; returns NCHW."""
    N, C, H, W = x_nchw.shape
    Cout = params["conv1_w"].shape[0]
    assert C == Cout, "models the stride=1 / no-downsample path (inplanes == planes)"
    HW = H * W
    M = N * HW
    pad_len = HW + 2 * (W + 1)

    # Free reshape only (no HBM transpose): m = h*W + w per image.
    x_flat = x_nchw.reshape(N, C, HW).astype(jnp.float32)
    # OIHW -> (kh*3+kw, O, I), bf16 once for the MXU.
    w1 = jnp.transpose(params["conv1_w"], (2, 3, 0, 1)).reshape(9, C, C).astype(jnp.bfloat16)
    w2 = jnp.transpose(params["conv2_w"], (2, 3, 0, 1)).reshape(9, C, C).astype(jnp.bfloat16)
    g1 = params["bn1_gamma"].astype(jnp.float32)
    b1 = params["bn1_beta"].astype(jnp.float32)
    g2 = params["bn2_gamma"].astype(jnp.float32)
    b2 = params["bn2_beta"].astype(jnp.float32)

    act_spec = pl.BlockSpec((None, C, HW), lambda n: (n, 0, 0))       # per-image tile
    stat_spec = pl.BlockSpec((None, C, 2), lambda n: (n, 0, 0))
    w_spec = pl.BlockSpec((9, C, C), lambda n: (0, 0, 0))             # VMEM-resident weights
    vec_spec = pl.BlockSpec((C, 1), lambda n: (0, 0))                 # VMEM-resident BN params
    act_out = jax.ShapeDtypeStruct((N, C, HW), jnp.float32)
    stat_out = jax.ShapeDtypeStruct((N, C, 2), jnp.float32)
    pad_scratch = pltpu.VMEM((C, pad_len), jnp.float32)

    act_bytes = C * HW * 4
    conv_params = _compiler_params(
        tiled_bytes=2 * act_bytes + C * 2 * 4,
        resident_bytes=9 * C * C * 2 + C * pad_len * 4 + 2 * C * 4)

    # ---- Pass 1: conv1 + per-image BN1 partial stats --------------------------------
    y1_raw, stats1 = pl.pallas_call(
        functools.partial(conv1_kernel, W=W),
        grid=(N,),
        in_specs=[act_spec, w_spec],
        out_specs=[act_spec, stat_spec],
        out_shape=[act_out, stat_out],
        scratch_shapes=[pad_scratch],
        compiler_params=conv_params,
    )(x_flat, w1)
    scale1, shift1 = _bn_scale_shift(stats1, g1, b1, M)

    # ---- Pass 2: BN1 apply + ReLU + conv2 + per-image BN2 partial stats --------------
    y2_raw, stats2 = pl.pallas_call(
        functools.partial(bn_relu_conv2_kernel, W=W),
        grid=(N,),
        in_specs=[act_spec, vec_spec, vec_spec, w_spec],
        out_specs=[act_spec, stat_spec],
        out_shape=[act_out, stat_out],
        scratch_shapes=[pad_scratch],
        compiler_params=conv_params,
    )(y1_raw, scale1, shift1, w2)
    scale2, shift2 = _bn_scale_shift(stats2, g2, b2, M)

    # ---- Pass 3: BN2 apply + residual + ReLU ------------------------------------------
    elem_params = _compiler_params(tiled_bytes=3 * act_bytes, resident_bytes=2 * C * 4)
    out_flat = pl.pallas_call(
        bn_add_relu_kernel,
        grid=(N,),
        in_specs=[act_spec, act_spec, vec_spec, vec_spec],
        out_specs=act_spec,
        out_shape=act_out,
        compiler_params=elem_params,
    )(y2_raw, x_flat, scale2, shift2)

    return out_flat.reshape(N, C, H, W)


# ----------------------------------------------------------------------------
# Pure-JAX reference (matches the PyTorch forward, train-mode BN) + test
# ----------------------------------------------------------------------------
def basic_block_reference(x_nchw, params):
    def conv3x3(x, w):
        return lax.conv_general_dilated(
            x, w, window_strides=(1, 1), padding=((1, 1), (1, 1)),
            dimension_numbers=("NCHW", "OIHW", "NCHW"))

    def bn(x, g, b):
        mean = jnp.mean(x, axis=(0, 2, 3), keepdims=True)
        var = jnp.mean((x - mean) ** 2, axis=(0, 2, 3), keepdims=True)
        return ((x - mean) * lax.rsqrt(var + EPS)
                * g.reshape(1, -1, 1, 1) + b.reshape(1, -1, 1, 1))

    out = conv3x3(x_nchw, params["conv1_w"])
    out = jax.nn.relu(bn(out, params["bn1_gamma"], params["bn1_beta"]))
    out = conv3x3(out, params["conv2_w"])
    out = bn(out, params["bn2_gamma"], params["bn2_beta"])
    return jax.nn.relu(out + x_nchw)


def init_params(key, inplanes, planes):
    k1, k2, k3, k4 = jax.random.split(key, 4)
    return {
        # PyTorch conv weight layout: (Cout, Cin, kh, kw)
        "conv1_w": 0.1 * jax.random.normal(k1, (planes, inplanes, 3, 3), jnp.float32),
        "conv2_w": 0.1 * jax.random.normal(k2, (planes, planes, 3, 3), jnp.float32),
        "bn1_gamma": 1.0 + 0.1 * jax.random.normal(k3, (planes,), jnp.float32),
        "bn1_beta": 0.05 * jnp.ones((planes,), jnp.float32),
        "bn2_gamma": 1.0 + 0.1 * jax.random.normal(k4, (planes,), jnp.float32),
        "bn2_beta": -0.05 * jnp.ones((planes,), jnp.float32),
    }


if __name__ == "__main__":
    key = jax.random.PRNGKey(0)
    kx, kp = jax.random.split(key)

    N, C, H, W = 2, 4, 16, 16          # inplanes = planes = 4, stride = 1
    x = jax.random.normal(kx, (N, C, H, W), jnp.float32)
    params = init_params(kp, inplanes=C, planes=C)

    out = jax.block_until_ready(jax.jit(basic_block_forward)(x, params))
    ref = jax.block_until_ready(basic_block_reference(x, params))
    # bf16 MXU operands with f32 accumulation -> slightly relaxed tolerance.
    np.testing.assert_allclose(np.asarray(out), np.asarray(ref), rtol=2e-2, atol=2e-2)

    print("KERNEL_OK")
</pallas_src>

<mosaic_0001>
module attributes {stable_mosaic.version = 11 : i64} {
  func.func @conv1_kernel(%arg0: i32, %arg1: memref<1x4x256xf32, #tpu.memory_space<vmem>>, %arg2: memref<9x4x4xbf16, #tpu.memory_space<vmem>>, %arg3: memref<1x4x256xf32, #tpu.memory_space<vmem>>, %arg4: memref<1x4x2xf32, #tpu.memory_space<vmem>>, %arg5: memref<4x290xf32, #tpu.memory_space<vmem>>) attributes {dimension_semantics = [#tpu.dimension_semantics<parallel>], iteration_bounds = array<i64: 2>, scalar_prefetch = 0 : i64, scratch_operands = 1 : i64, tpu.core_type = #tpu.core_type<tc>, window_params = [{transform_indices = @transform_0, window_bounds = array<i64: 1, 4, 256>}, {pipeline_mode = #tpu.pipeline_mode<synchronous>, transform_indices = @transform_1, window_bounds = array<i64: 9, 4, 4>}, {transform_indices = @transform_2, window_bounds = array<i64: 1, 4, 256>}, {transform_indices = @transform_3, window_bounds = array<i64: 1, 4, 2>}]} {
    %c0 = arith.constant 0 : index
    %c0_0 = arith.constant 0 : index
    %c0_1 = arith.constant 0 : index
    %0 = vector.load %arg1[%c0, %c0_0, %c0_1] : memref<1x4x256xf32, #tpu.memory_space<vmem>>, vector<1x4x256xf32>
    %1 = vector.shape_cast %0 : vector<1x4x256xf32> to vector<4x256xf32>
    %cst = arith.constant 0.000000e+00 : f32
    %2 = vector.broadcast %cst : f32 to vector<4x17xf32>
    %c0_2 = arith.constant 0 : index
    %c0_3 = arith.constant 0 : index
    %3 = vector.load %arg5[%c0_2, %c0_3] : memref<4x290xf32, #tpu.memory_space<vmem>>, vector<4x17xf32>
    tpu.vector_store %arg5[%c0_2, %c0_3], %2 {strides = array<i32>} : memref<4x290xf32, #tpu.memory_space<vmem>>, vector<4x17xf32>,
    %c0_4 = arith.constant 0 : index
    %c17 = arith.constant 17 : index
    %4 = vector.load %arg5[%c0_4, %c17] : memref<4x290xf32, #tpu.memory_space<vmem>>, vector<4x256xf32>
    tpu.vector_store %arg5[%c0_4, %c17], %1 {strides = array<i32>} : memref<4x290xf32, #tpu.memory_space<vmem>>, vector<4x256xf32>,
    %c0_5 = arith.constant 0 : index
    %c273 = arith.constant 273 : index
    %5 = vector.load %arg5[%c0_5, %c273] : memref<4x290xf32, #tpu.memory_space<vmem>>, vector<4x17xf32>
    tpu.vector_store %arg5[%c0_5, %c273], %2 {strides = array<i32>} : memref<4x290xf32, #tpu.memory_space<vmem>>, vector<4x17xf32>,
    %6 = tpu.iota {dimensions = array<i32: 1>} : vector<1x256xi32>
    %c16_i32 = arith.constant 16 : i32
    %c0_i32 = arith.constant 0 : i32
    %7 = arith.cmpi eq, %c16_i32, %c0_i32 : i32
    %c1_i32 = arith.constant 1 : i32
    %8 = arith.select %7, %c1_i32, %c16_i32 : i32
    %9 = vector.broadcast %8 : i32 to vector<1x256xi32>
    %10 = arith.remsi %6, %9 : vector<1x256xi32>
    %c0_i32_6 = arith.constant 0 : i32
    %11 = vector.broadcast %c0_i32_6 : i32 to vector<1x256xi32>
    %12 = arith.cmpi ne, %10, %11 : vector<1x256xi32>
    %c0_i32_7 = arith.constant 0 : i32
    %13 = vector.broadcast %c0_i32_7 : i32 to vector<1x256xi32>
    %14 = arith.cmpi slt, %10, %13 : vector<1x256xi32>
    %c0_i32_8 = arith.constant 0 : i32
    %15 = arith.cmpi slt, %8, %c0_i32_8 : i32
    %16 = vector.broadcast %15 : i1 to vector<1x256xi1>
    %17 = vector.broadcast %16 : vector<1x256xi1> to vector<1x256xi1>
    %18 = arith.xori %14, %17 : vector<1x256xi1>
    %19 = arith.andi %18, %12 : vector<1x256xi1>
    %20 = vector.broadcast %8 : i32 to vector<1x256xi32>
    %21 = arith.addi %10, %20 : vector<1x256xi32>
    %22 = arith.select %19, %21, %10 : vector<1x256xi1>, vector<1x256xi32>
    %c1_i32_9 = arith.constant 1 : i32
    %23 = vector.broadcast %c1_i32_9 : i32 to vector<1x256xi32>
    %24 = arith.cmpi sge, %22, %23 : vector<1x256xi32>
    %c14_i32 = arith.constant 14 : i32
    %25 = vector.broadcast %c14_i32 : i32 to vector<1x256xi32>
    %26 = arith.cmpi sle, %22, %25 : vector<1x256xi32>
    %c0_10 = arith.constant 0 : index
    %c0_11 = arith.constant 0 : index
    %27 = vector.load %arg5[%c0_10, %c0_11] : memref<4x290xf32, #tpu.memory_space<vmem>>, vector<4x256xf32>
    %cst_12 = arith.constant 0.000000e+00 : f32
    %28 = vector.shape_cast %24 : vector<1x256xi1> to vector<1x256xi1>
    %29 = vector.broadcast %28 : vector<1x256xi1> to vector<4x256xi1>
    %30 = vector.broadcast %cst_12 : f32 to vector<4x256xf32>
    %31 = arith.select %29, %27, %30 : vector<4x256xi1>, vector<4x256xf32>
    %c0_13 = arith.constant 0 : index
    %c0_14 = arith.constant 0 : index
    %c0_15 = arith.constant 0 : index
    %32 = vector.load %arg2[%c0_13, %c0_14, %c0_15] : memref<9x4x4xbf16, #tpu.memory_space<vmem>>, vector<1x4x4xbf16>
    %33 = vector.shape_cast %32 : vector<1x4x4xbf16> to vector<4x4xbf16>
    %34 = arith.truncf %31 : vector<4x256xf32> to vector<4x256xbf16>
    %cst_16 = arith.constant dense<0.000000e+00> : vector<4x256xf32>
    %35 = tpu.matmul %33, %34, %cst_16 {dimension_numbers = #tpu.dot_dimension_numbers<[1], [0], [0], [1], [0, 0, 1, 1], [], []>} : vector<4x4xbf16>, vector<4x256xbf16>, vector<4x256xf32> -> vector<4x256xf32>
    %c0_17 = arith.constant 0 : index
    %c1 = arith.constant 1 : index
    %36 = vector.load %arg5[%c0_17, %c1] : memref<4x290xf32, #tpu.memory_space<vmem>>, vector<4x256xf32>
    %c1_18 = arith.constant 1 : index
    %c0_19 = arith.constant 0 : index
    %c0_20 = arith.constant 0 : index
    %37 = vector.load %arg2[%c1_18, %c0_19, %c0_20] : memref<9x4x4xbf16, #tpu.memory_space<vmem>>, vector<1x4x4xbf16>
    %38 = vector.shape_cast %37 : vector<1x4x4xbf16> to vector<4x4xbf16>
    %39 = arith.truncf %36 : vector<4x256xf32> to vector<4x256xbf16>
    %cst_21 = arith.constant dense<0.000000e+00> : vector<4x256xf32>
    %40 = tpu.matmul %38, %39, %cst_21 {dimension_numbers = #tpu.dot_dimension_numbers<[1], [0], [0], [1], [0, 0, 1, 1], [], []>} : vector<4x4xbf16>, vector<4x256xbf16>, vector<4x256xf32> -> vector<4x256xf32>
    %41 = arith.addf %35, %40 : vector<4x256xf32>
    %c0_22 = arith.constant 0 : index
    %c2 = arith.constant 2 : index
    %42 = vector.load %arg5[%c0_22, %c2] : memref<4x290xf32, #tpu.memory_space<vmem>>, vector<4x256xf32>
    %cst_23 = arith.constant 0.000000e+00 : f32
    %43 = vector.shape_cast %26 : vector<1x256xi1> to vector<1x256xi1>
    %44 = vector.broadcast %43 : vector<1x256xi1> to vector<4x256xi1>
    %45 = vector.broadcast %cst_23 : f32 to vector<4x256xf32>
    %46 = arith.select %44, %42, %45 : vector<4x256xi1>, vector<4x256xf32>
    %c2_24 = arith.constant 2 : index
    %c0_25 = arith.constant 0 : index
    %c0_26 = arith.constant 0 : index
    %47 = vector.load %arg2[%c2_24, %c0_25, %c0_26] : memref<9x4x4xbf16, #tpu.memory_space<vmem>>, vector<1x4x4xbf16>
    %48 = vector.shape_cast %47 : vector<1x4x4xbf16> to vector<4x4xbf16>
    %49 = arith.truncf %46 : vector<4x256xf32> to vector<4x256xbf16>
    %cst_27 = arith.constant dense<0.000000e+00> : vector<4x256xf32>
    %50 = tpu.matmul %48, %49, %cst_27 {dimension_numbers = #tpu.dot_dimension_numbers<[1], [0], [0], [1], [0, 0, 1, 1], [], []>} : vector<4x4xbf16>, vector<4x256xbf16>, vector<4x256xf32> -> vector<4x256xf32>
    %51 = arith.addf %41, %50 : vector<4x256xf32>
    %c0_28 = arith.constant 0 : index
    %c16 = arith.constant 16 : index
    %52 = vector.load %arg5[%c0_28, %c16] : memref<4x290xf32, #tpu.memory_space<vmem>>, vector<4x256xf32>
    %cst_29 = arith.constant 0.000000e+00 : f32
    %53 = vector.shape_cast %24 : vector<1x256xi1> to vector<1x256xi1>
    %54 = vector.broadcast %53 : vector<1x256xi1> to vector<4x256xi1>
    %55 = vector.broadcast %cst_29 : f32 to vector<4x256xf32>
    %56 = arith.select %54, %52, %55 : vector<4x256xi1>, vector<4x256xf32>
    %c3 = arith.constant 3 : index
    %c0_30 = arith.constant 0 : index
    %c0_31 = arith.constant 0 : index
    %57 = vector.load %arg2[%c3, %c0_30, %c0_31] : memref<9x4x4xbf16, #tpu.memory_space<vmem>>, vector<1x4x4xbf16>
    %58 = vector.shape_cast %57 : vector<1x4x4xbf16> to vector<4x4xbf16>
    %59 = arith.truncf %56 : vector<4x256xf32> to vector<4x256xbf16>
    %cst_32 = arith.constant dense<0.000000e+00> : vector<4x256xf32>
    %60 = tpu.matmul %58, %59, %cst_32 {dimension_numbers = #tpu.dot_dimension_numbers<[1], [0], [0], [1], [0, 0, 1, 1], [], []>} : vector<4x4xbf16>, vector<4x256xbf16>, vector<4x256xf32> -> vector<4x256xf32>
    %61 = arith.addf %51, %60 : vector<4x256xf32>
    %c0_33 = arith.constant 0 : index
    %c17_34 = arith.constant 17 : index
    %62 = vector.load %arg5[%c0_33, %c17_34] : memref<4x290xf32, #tpu.memory_space<vmem>>, vector<4x256xf32>
    %c4 = arith.constant 4 : index
    %c0_35 = arith.constant 0 : index
    %c0_36 = arith.constant 0 : index
    %63 = vector.load %arg2[%c4, %c0_35, %c0_36] : memref<9x4x4xbf16, #tpu.memory_space<vmem>>, vector<1x4x4xbf16>
    %64 = vector.shape_cast %63 : vector<1x4x4xbf16> to vector<4x4xbf16>
    %65 = arith.truncf %62 : vector<4x256xf32> to vector<4x256xbf16>
    %cst_37 = arith.constant dense<0.000000e+00> : vector<4x256xf32>
    %66 = tpu.matmul %64, %65, %cst_37 {dimension_numbers = #tpu.dot_dimension_numbers<[1], [0], [0], [1], [0, 0, 1, 1], [], []>} : vector<4x4xbf16>, vector<4x256xbf16>, vector<4x256xf32> -> vector<4x256xf32>
    %67 = arith.addf %61, %66 : vector<4x256xf32>
    %c0_38 = arith.constant 0 : index
    %c18 = arith.constant 18 : index
    %68 = vector.load %arg5[%c0_38, %c18] : memref<4x290xf32, #tpu.memory_space<vmem>>, vector<4x256xf32>
    %cst_39 = arith.constant 0.000000e+00 : f32
    %69 = vector.shape_cast %26 : vector<1x256xi1> to vector<1x256xi1>
    %70 = vector.broadcast %69 : vector<1x256xi1> to vector<4x256xi1>
    %71 = vector.broadcast %cst_39 : f32 to vector<4x256xf32>
    %72 = arith.select %70, %68, %71 : vector<4x256xi1>, vector<4x256xf32>
    %c5 = arith.constant 5 : index
    %c0_40 = arith.constant 0 : index
    %c0_41 = arith.constant 0 : index
    %73 = vector.load %arg2[%c5, %c0_40, %c0_41] : memref<9x4x4xbf16, #tpu.memory_space<vmem>>, vector<1x4x4xbf16>
    %74 = vector.shape_cast %73 : vector<1x4x4xbf16> to vector<4x4xbf16>
    %75 = arith.truncf %72 : vector<4x256xf32> to vector<4x256xbf16>
    %cst_42 = arith.constant dense<0.000000e+00> : vector<4x256xf32>
    %76 = tpu.matmul %74, %75, %cst_42 {dimension_numbers = #tpu.dot_dimension_numbers<[1], [0], [0], [1], [0, 0, 1, 1], [], []>} : vector<4x4xbf16>, vector<4x256xbf16>, vector<4x256xf32> -> vector<4x256xf32>
    %77 = arith.addf %67, %76 : vector<4x256xf32>
    %c0_43 = arith.constant 0 : index
    %c32 = arith.constant 32 : index
    %78 = vector.load %arg5[%c0_43, %c32] : memref<4x290xf32, #tpu.memory_space<vmem>>, vector<4x256xf32>
    %cst_44 = arith.constant 0.000000e+00 : f32
    %79 = vector.shape_cast %24 : vector<1x256xi1> to vector<1x256xi1>
    %80 = vector.broadcast %79 : vector<1x256xi1> to vector<4x256xi1>
    %81 = vector.broadcast %cst_44 : f32 to vector<4x256xf32>
    %82 = arith.select %80, %78, %81 : vector<4x256xi1>, vector<4x256xf32>
    %c6 = arith.constant 6 : index
    %c0_45 = arith.constant 0 : index
    %c0_46 = arith.constant 0 : index
    %83 = vector.load %arg2[%c6, %c0_45, %c0_46] : memref<9x4x4xbf16, #tpu.memory_space<vmem>>, vector<1x4x4xbf16>
    %84 = vector.shape_cast %83 : vector<1x4x4xbf16> to vector<4x4xbf16>
    %85 = arith.truncf %82 : vector<4x256xf32> to vector<4x256xbf16>
    %cst_47 = arith.constant dense<0.000000e+00> : vector<4x256xf32>
    %86 = tpu.matmul %84, %85, %cst_47 {dimension_numbers = #tpu.dot_dimension_numbers<[1], [0], [0], [1], [0, 0, 1, 1], [], []>} : vector<4x4xbf16>, vector<4x256xbf16>, vector<4x256xf32> -> vector<4x256xf32>
    %87 = arith.addf %77, %86 : vector<4x256xf32>
    %c0_48 = arith.constant 0 : index
    %c33 = arith.constant 33 : index
    %88 = vector.load %arg5[%c0_48, %c33] : memref<4x290xf32, #tpu.memory_space<vmem>>, vector<4x256xf32>
    %c7 = arith.constant 7 : index
    %c0_49 = arith.constant 0 : index
    %c0_50 = arith.constant 0 : index
    %89 = vector.load %arg2[%c7, %c0_49, %c0_50] : memref<9x4x4xbf16, #tpu.memory_space<vmem>>, vector<1x4x4xbf16>
    %90 = vector.shape_cast %89 : vector<1x4x4xbf16> to vector<4x4xbf16>
    %91 = arith.truncf %88 : vector<4x256xf32> to vector<4x256xbf16>
    %cst_51 = arith.constant dense<0.000000e+00> : vector<4x256xf32>
    %92 = tpu.matmul %90, %91, %cst_51 {dimension_numbers = #tpu.dot_dimension_numbers<[1], [0], [0], [1], [0, 0, 1, 1], [], []>} : vector<4x4xbf16>, vector<4x256xbf16>, vector<4x256xf32> -> vector<4x256xf32>
    %93 = arith.addf %87, %92 : vector<4x256xf32>
    %c0_52 = arith.constant 0 : index
    %c34 = arith.constant 34 : index
    %94 = vector.load %arg5[%c0_52, %c34] : memref<4x290xf32, #tpu.memory_space<vmem>>, vector<4x256xf32>
    %cst_53 = arith.constant 0.000000e+00 : f32
    %95 = vector.shape_cast %26 : vector<1x256xi1> to vector<1x256xi1>
    %96 = vector.broadcast %95 : vector<1x256xi1> to vector<4x256xi1>
    %97 = vector.broadcast %cst_53 : f32 to vector<4x256xf32>
    %98 = arith.select %96, %94, %97 : vector<4x256xi1>, vector<4x256xf32>
    %c8 = arith.constant 8 : index
    %c0_54 = arith.constant 0 : index
    %c0_55 = arith.constant 0 : index
    %99 = vector.load %arg2[%c8, %c0_54, %c0_55] : memref<9x4x4xbf16, #tpu.memory_space<vmem>>, vector<1x4x4xbf16>
    %100 = vector.shape_cast %99 : vector<1x4x4xbf16> to vector<4x4xbf16>
    %101 = arith.truncf %98 : vector<4x256xf32> to vector<4x256xbf16>
    %cst_56 = arith.constant dense<0.000000e+00> : vector<4x256xf32>
    %102 = tpu.matmul %100, %101, %cst_56 {dimension_numbers = #tpu.dot_dimension_numbers<[1], [0], [0], [1], [0, 0, 1, 1], [], []>} : vector<4x4xbf16>, vector<4x256xbf16>, vector<4x256xf32> -> vector<4x256xf32>
    %103 = arith.addf %93, %102 : vector<4x256xf32>
    %c0_57 = arith.constant 0 : index
    %c0_58 = arith.constant 0 : index
    %c0_59 = arith.constant 0 : index
    %104 = vector.load %arg3[%c0_57, %c0_58, %c0_59] : memref<1x4x256xf32, #tpu.memory_space<vmem>>, vector<1x4x256xf32>
    %105 = vector.shape_cast %104 : vector<1x4x256xf32> to vector<4x256xf32>
    %106 = vector.shape_cast %103 : vector<4x256xf32> to vector<1x4x256xf32>
    tpu.vector_store %arg3[%c0_57, %c0_58, %c0_59], %106 {strides = array<i32>} : memref<1x4x256xf32, #tpu.memory_space<vmem>>, vector<1x4x256xf32>,
    %cst_60 = arith.constant dense<0.000000e+00> : vector<4xf32>
    %107 = vector.multi_reduction <add>, %103, %cst_60 [1] : vector<4x256xf32> to vector<4xf32>
    %108 = vector.shape_cast %107 : vector<4xf32> to vector<4x1xf32>
    %109 = arith.mulf %103, %103 : vector<4x256xf32>
    %cst_61 = arith.constant dense<0.000000e+00> : vector<4xf32>
    %110 = vector.multi_reduction <add>, %109, %cst_61 [1] : vector<4x256xf32> to vector<4xf32>
    %111 = vector.shape_cast %110 : vector<4xf32> to vector<4x1xf32>
    %112 = tpu.concatenate %108, %111 in 1 : vector<4x1xf32>, vector<4x1xf32> -> vector<4x2xf32>
    %c0_62 = arith.constant 0 : index
    %c0_63 = arith.constant 0 : index
    %c0_64 = arith.constant 0 : index
    %113 = vector.load %arg4[%c0_62, %c0_63, %c0_64] : memref<1x4x2xf32, #tpu.memory_space<vmem>>, vector<1x4x2xf32>
    %114 = vector.shape_cast %113 : vector<1x4x2xf32> to vector<4x2xf32>
    %115 = vector.shape_cast %112 : vector<4x2xf32> to vector<1x4x2xf32>
    tpu.vector_store %arg4[%c0_62, %c0_63, %c0_64], %115 {strides = array<i32>} : memref<1x4x2xf32, #tpu.memory_space<vmem>>, vector<1x4x2xf32>,
    return
  }
  func.func @transform_0(%arg0: i32) -> (i32, i32, i32) {
    %c0_i32 = arith.constant 0 : i32
    %c0_i32_0 = arith.constant 0 : i32
    %c0_i32_1 = arith.constant 0 : i32
    return %arg0, %c0_i32, %c0_i32_0 : i32, i32, i32
  }
  func.func @transform_1(%arg0: i32) -> (i32, i32, i32) {
    %c0_i32 = arith.constant 0 : i32
    %c0_i32_0 = arith.constant 0 : i32
    %c0_i32_1 = arith.constant 0 : i32
    %c0_i32_2 = arith.constant 0 : i32
    return %c0_i32, %c0_i32_0, %c0_i32_1 : i32, i32, i32
  }
  func.func @transform_2(%arg0: i32) -> (i32, i32, i32) {
    %c0_i32 = arith.constant 0 : i32
    %c0_i32_0 = arith.constant 0 : i32
    %c0_i32_1 = arith.constant 0 : i32
    return %arg0, %c0_i32, %c0_i32_0 : i32, i32, i32
  }
  func.func @transform_3(%arg0: i32) -> (i32, i32, i32) {
    %c0_i32 = arith.constant 0 : i32
    %c0_i32_0 = arith.constant 0 : i32
    %c0_i32_1 = arith.constant 0 : i32
    return %arg0, %c0_i32, %c0_i32_0 : i32, i32, i32
  }
}

module attributes {stable_mosaic.version = 11 : i64} {
  func.func @bn_add_relu_kernel(%arg0: i32, %arg1: memref<1x4x256xf32, #tpu.memory_space<vmem>>, %arg2: memref<1x4x256xf32, #tpu.memory_space<vmem>>, %arg3: memref<4x1xf32, #tpu.memory_space<vmem>>, %arg4: memref<4x1xf32, #tpu.memory_space<vmem>>, %arg5: memref<1x4x256xf32, #tpu.memory_space<vmem>>) attributes {dimension_semantics = [#tpu.dimension_semantics<parallel>], iteration_bounds = array<i64: 2>, scalar_prefetch = 0 : i64, scratch_operands = 0 : i64, tpu.core_type = #tpu.core_type<tc>, window_params = [{transform_indices = @transform_0, window_bounds = array<i64: 1, 4, 256>}, {transform_indices = @transform_1, window_bounds = array<i64: 1, 4, 256>}, {pipeline_mode = #tpu.pipeline_mode<synchronous>, transform_indices = @transform_2, window_bounds = array<i64: 4, 1>}, {pipeline_mode = #tpu.pipeline_mode<synchronous>, transform_indices = @transform_3, window_bounds = array<i64: 4, 1>}, {transform_indices = @transform_4, window_bounds = array<i64: 1, 4, 256>}]} {
    %c0 = arith.constant 0 : index
    %c0_0 = arith.constant 0 : index
    %c0_1 = arith.constant 0 : index
    %0 = vector.load %arg1[%c0, %c0_0, %c0_1] : memref<1x4x256xf32, #tpu.memory_space<vmem>>, vector<1x4x256xf32>
    %1 = vector.shape_cast %0 : vector<1x4x256xf32> to vector<4x256xf32>
    %c0_2 = arith.constant 0 : index
    %c0_3 = arith.constant 0 : index
    %2 = vector.load %arg3[%c0_2, %c0_3] : memref<4x1xf32, #tpu.memory_space<vmem>>, vector<4x1xf32>
    %3 = vector.broadcast %2 : vector<4x1xf32> to vector<4x256xf32>
    %4 = arith.mulf %1, %3 : vector<4x256xf32>
    %c0_4 = arith.constant 0 : index
    %c0_5 = arith.constant 0 : index
    %5 = vector.load %arg4[%c0_4, %c0_5] : memref<4x1xf32, #tpu.memory_space<vmem>>, vector<4x1xf32>
    %6 = vector.broadcast %5 : vector<4x1xf32> to vector<4x256xf32>
    %7 = arith.addf %4, %6 : vector<4x256xf32>
    %c0_6 = arith.constant 0 : index
    %c0_7 = arith.constant 0 : index
    %c0_8 = arith.constant 0 : index
    %8 = vector.load %arg2[%c0_6, %c0_7, %c0_8] : memref<1x4x256xf32, #tpu.memory_space<vmem>>, vector<1x4x256xf32>
    %9 = vector.shape_cast %8 : vector<1x4x256xf32> to vector<4x256xf32>
    %10 = arith.addf %7, %9 : vector<4x256xf32>
    %cst = arith.constant 0.000000e+00 : f32
    %11 = vector.broadcast %cst : f32 to vector<4x256xf32>
    %12 = arith.maximumf %10, %11 : vector<4x256xf32>
    %c0_9 = arith.constant 0 : index
    %c0_10 = arith.constant 0 : index
    %c0_11 = arith.constant 0 : index
    %13 = vector.load %arg5[%c0_9, %c0_10, %c0_11] : memref<1x4x256xf32, #tpu.memory_space<vmem>>, vector<1x4x256xf32>
    %14 = vector.shape_cast %13 : vector<1x4x256xf32> to vector<4x256xf32>
    %15 = vector.shape_cast %12 : vector<4x256xf32> to vector<1x4x256xf32>
    tpu.vector_store %arg5[%c0_9, %c0_10, %c0_11], %15 {strides = array<i32>} : memref<1x4x256xf32, #tpu.memory_space<vmem>>, vector<1x4x256xf32>,
    return
  }
  func.func @transform_0(%arg0: i32) -> (i32, i32, i32) {
    %c0_i32 = arith.constant 0 : i32
    %c0_i32_0 = arith.constant 0 : i32
    %c0_i32_1 = arith.constant 0 : i32
    return %arg0, %c0_i32, %c0_i32_0 : i32, i32, i32
  }
  func.func @transform_1(%arg0: i32) -> (i32, i32, i32) {
    %c0_i32 = arith.constant 0 : i32
    %c0_i32_0 = arith.constant 0 : i32
    %c0_i32_1 = arith.constant 0 : i32
    return %arg0, %c0_i32, %c0_i32_0 : i32, i32, i32
  }
  func.func @transform_2(%arg0: i32) -> (i32, i32) {
    %c0_i32 = arith.constant 0 : i32
    %c0_i32_0 = arith.constant 0 : i32
    %c0_i32_1 = arith.constant 0 : i32
    return %c0_i32, %c0_i32_0 : i32, i32
  }
  func.func @transform_3(%arg0: i32) -> (i32, i32) {
    %c0_i32 = arith.constant 0 : i32
    %c0_i32_0 = arith.constant 0 : i32
    %c0_i32_1 = arith.constant 0 : i32
    return %c0_i32, %c0_i32_0 : i32, i32
  }
  func.func @transform_4(%arg0: i32) -> (i32, i32, i32) {
    %c0_i32 = arith.constant 0 : i32
    %c0_i32_0 = arith.constant 0 : i32
    %c0_i32_1 = arith.constant 0 : i32
    return %arg0, %c0_i32, %c0_i32_0 : i32, i32, i32
  }
}

module attributes {stable_mosaic.version = 11 : i64} {
  func.func @bn_relu_conv2_kernel(%arg0: i32, %arg1: memref<1x4x256xf32, #tpu.memory_space<vmem>>, %arg2: memref<4x1xf32, #tpu.memory_space<vmem>>, %arg3: memref<4x1xf32, #tpu.memory_space<vmem>>, %arg4: memref<9x4x4xbf16, #tpu.memory_space<vmem>>, %arg5: memref<1x4x256xf32, #tpu.memory_space<vmem>>, %arg6: memref<1x4x2xf32, #tpu.memory_space<vmem>>, %arg7: memref<4x290xf32, #tpu.memory_space<vmem>>) attributes {dimension_semantics = [#tpu.dimension_semantics<parallel>], iteration_bounds = array<i64: 2>, scalar_prefetch = 0 : i64, scratch_operands = 1 : i64, tpu.core_type = #tpu.core_type<tc>, window_params = [{transform_indices = @transform_0, window_bounds = array<i64: 1, 4, 256>}, {pipeline_mode = #tpu.pipeline_mode<synchronous>, transform_indices = @transform_1, window_bounds = array<i64: 4, 1>}, {pipeline_mode = #tpu.pipeline_mode<synchronous>, transform_indices = @transform_2, window_bounds = array<i64: 4, 1>}, {pipeline_mode = #tpu.pipeline_mode<synchronous>, transform_indices = @transform_3, window_bounds = array<i64: 9, 4, 4>}, {transform_indices = @transform_4, window_bounds = array<i64: 1, 4, 256>}, {transform_indices = @transform_5, window_bounds = array<i64: 1, 4, 2>}]} {
    %c0 = arith.constant 0 : index
    %c0_0 = arith.constant 0 : index
    %c0_1 = arith.constant 0 : index
    %0 = vector.load %arg1[%c0, %c0_0, %c0_1] : memref<1x4x256xf32, #tpu.memory_space<vmem>>, vector<1x4x256xf32>
    %1 = vector.shape_cast %0 : vector<1x4x256xf32> to vector<4x256xf32>
    %c0_2 = arith.constant 0 : index
    %c0_3 = arith.constant 0 : index
    %2 = vector.load %arg2[%c0_2, %c0_3] : memref<4x1xf32, #tpu.memory_space<vmem>>, vector<4x1xf32>
    %3 = vector.broadcast %2 : vector<4x1xf32> to vector<4x256xf32>
    %4 = arith.mulf %1, %3 : vector<4x256xf32>
    %c0_4 = arith.constant 0 : index
    %c0_5 = arith.constant 0 : index
    %5 = vector.load %arg3[%c0_4, %c0_5] : memref<4x1xf32, #tpu.memory_space<vmem>>, vector<4x1xf32>
    %6 = vector.broadcast %5 : vector<4x1xf32> to vector<4x256xf32>
    %7 = arith.addf %4, %6 : vector<4x256xf32>
    %cst = arith.constant 0.000000e+00 : f32
    %8 = vector.broadcast %cst : f32 to vector<4x256xf32>
    %9 = arith.maximumf %7, %8 : vector<4x256xf32>
    %cst_6 = arith.constant 0.000000e+00 : f32
    %10 = vector.broadcast %cst_6 : f32 to vector<4x17xf32>
    %c0_7 = arith.constant 0 : index
    %c0_8 = arith.constant 0 : index
    %11 = vector.load %arg7[%c0_7, %c0_8] : memref<4x290xf32, #tpu.memory_space<vmem>>, vector<4x17xf32>
    tpu.vector_store %arg7[%c0_7, %c0_8], %10 {strides = array<i32>} : memref<4x290xf32, #tpu.memory_space<vmem>>, vector<4x17xf32>,
    %c0_9 = arith.constant 0 : index
    %c17 = arith.constant 17 : index
    %12 = vector.load %arg7[%c0_9, %c17] : memref<4x290xf32, #tpu.memory_space<vmem>>, vector<4x256xf32>
    tpu.vector_store %arg7[%c0_9, %c17], %9 {strides = array<i32>} : memref<4x290xf32, #tpu.memory_space<vmem>>, vector<4x256xf32>,
    %c0_10 = arith.constant 0 : index
    %c273 = arith.constant 273 : index
    %13 = vector.load %arg7[%c0_10, %c273] : memref<4x290xf32, #tpu.memory_space<vmem>>, vector<4x17xf32>
    tpu.vector_store %arg7[%c0_10, %c273], %10 {strides = array<i32>} : memref<4x290xf32, #tpu.memory_space<vmem>>, vector<4x17xf32>,
    %14 = tpu.iota {dimensions = array<i32: 1>} : vector<1x256xi32>
    %c16_i32 = arith.constant 16 : i32
    %c0_i32 = arith.constant 0 : i32
    %15 = arith.cmpi eq, %c16_i32, %c0_i32 : i32
    %c1_i32 = arith.constant 1 : i32
    %16 = arith.select %15, %c1_i32, %c16_i32 : i32
    %17 = vector.broadcast %16 : i32 to vector<1x256xi32>
    %18 = arith.remsi %14, %17 : vector<1x256xi32>
    %c0_i32_11 = arith.constant 0 : i32
    %19 = vector.broadcast %c0_i32_11 : i32 to vector<1x256xi32>
    %20 = arith.cmpi ne, %18, %19 : vector<1x256xi32>
    %c0_i32_12 = arith.constant 0 : i32
    %21 = vector.broadcast %c0_i32_12 : i32 to vector<1x256xi32>
    %22 = arith.cmpi slt, %18, %21 : vector<1x256xi32>
    %c0_i32_13 = arith.constant 0 : i32
    %23 = arith.cmpi slt, %16, %c0_i32_13 : i32
    %24 = vector.broadcast %23 : i1 to vector<1x256xi1>
    %25 = vector.broadcast %24 : vector<1x256xi1> to vector<1x256xi1>
    %26 = arith.xori %22, %25 : vector<1x256xi1>
    %27 = arith.andi %26, %20 : vector<1x256xi1>
    %28 = vector.broadcast %16 : i32 to vector<1x256xi32>
    %29 = arith.addi %18, %28 : vector<1x256xi32>
    %30 = arith.select %27, %29, %18 : vector<1x256xi1>, vector<1x256xi32>
    %c1_i32_14 = arith.constant 1 : i32
    %31 = vector.broadcast %c1_i32_14 : i32 to vector<1x256xi32>
    %32 = arith.cmpi sge, %30, %31 : vector<1x256xi32>
    %c14_i32 = arith.constant 14 : i32
    %33 = vector.broadcast %c14_i32 : i32 to vector<1x256xi32>
    %34 = arith.cmpi sle, %30, %33 : vector<1x256xi32>
    %c0_15 = arith.constant 0 : index
    %c0_16 = arith.constant 0 : index
    %35 = vector.load %arg7[%c0_15, %c0_16] : memref<4x290xf32, #tpu.memory_space<vmem>>, vector<4x256xf32>
    %cst_17 = arith.constant 0.000000e+00 : f32
    %36 = vector.shape_cast %32 : vector<1x256xi1> to vector<1x256xi1>
    %37 = vector.broadcast %36 : vector<1x256xi1> to vector<4x256xi1>
    %38 = vector.broadcast %cst_17 : f32 to vector<4x256xf32>
    %39 = arith.select %37, %35, %38 : vector<4x256xi1>, vector<4x256xf32>
    %c0_18 = arith.constant 0 : index
    %c0_19 = arith.constant 0 : index
    %c0_20 = arith.constant 0 : index
    %40 = vector.load %arg4[%c0_18, %c0_19, %c0_20] : memref<9x4x4xbf16, #tpu.memory_space<vmem>>, vector<1x4x4xbf16>
    %41 = vector.shape_cast %40 : vector<1x4x4xbf16> to vector<4x4xbf16>
    %42 = arith.truncf %39 : vector<4x256xf32> to vector<4x256xbf16>
    %cst_21 = arith.constant dense<0.000000e+00> : vector<4x256xf32>
    %43 = tpu.matmul %41, %42, %cst_21 {dimension_numbers = #tpu.dot_dimension_numbers<[1], [0], [0], [1], [0, 0, 1, 1], [], []>} : vector<4x4xbf16>, vector<4x256xbf16>, vector<4x256xf32> -> vector<4x256xf32>
    %c0_22 = arith.constant 0 : index
    %c1 = arith.constant 1 : index
    %44 = vector.load %arg7[%c0_22, %c1] : memref<4x290xf32, #tpu.memory_space<vmem>>, vector<4x256xf32>
    %c1_23 = arith.constant 1 : index
    %c0_24 = arith.constant 0 : index
    %c0_25 = arith.constant 0 : index
    %45 = vector.load %arg4[%c1_23, %c0_24, %c0_25] : memref<9x4x4xbf16, #tpu.memory_space<vmem>>, vector<1x4x4xbf16>
    %46 = vector.shape_cast %45 : vector<1x4x4xbf16> to vector<4x4xbf16>
    %47 = arith.truncf %44 : vector<4x256xf32> to vector<4x256xbf16>
    %cst_26 = arith.constant dense<0.000000e+00> : vector<4x256xf32>
    %48 = tpu.matmul %46, %47, %cst_26 {dimension_numbers = #tpu.dot_dimension_numbers<[1], [0], [0], [1], [0, 0, 1, 1], [], []>} : vector<4x4xbf16>, vector<4x256xbf16>, vector<4x256xf32> -> vector<4x256xf32>
    %49 = arith.addf %43, %48 : vector<4x256xf32>
    %c0_27 = arith.constant 0 : index
    %c2 = arith.constant 2 : index
    %50 = vector.load %arg7[%c0_27, %c2] : memref<4x290xf32, #tpu.memory_space<vmem>>, vector<4x256xf32>
    %cst_28 = arith.constant 0.000000e+00 : f32
    %51 = vector.shape_cast %34 : vector<1x256xi1> to vector<1x256xi1>
    %52 = vector.broadcast %51 : vector<1x256xi1> to vector<4x256xi1>
    %53 = vector.broadcast %cst_28 : f32 to vector<4x256xf32>
    %54 = arith.select %52, %50, %53 : vector<4x256xi1>, vector<4x256xf32>
    %c2_29 = arith.constant 2 : index
    %c0_30 = arith.constant 0 : index
    %c0_31 = arith.constant 0 : index
    %55 = vector.load %arg4[%c2_29, %c0_30, %c0_31] : memref<9x4x4xbf16, #tpu.memory_space<vmem>>, vector<1x4x4xbf16>
    %56 = vector.shape_cast %55 : vector<1x4x4xbf16> to vector<4x4xbf16>
    %57 = arith.truncf %54 : vector<4x256xf32> to vector<4x256xbf16>
    %cst_32 = arith.constant dense<0.000000e+00> : vector<4x256xf32>
    %58 = tpu.matmul %56, %57, %cst_32 {dimension_numbers = #tpu.dot_dimension_numbers<[1], [0], [0], [1], [0, 0, 1, 1], [], []>} : vector<4x4xbf16>, vector<4x256xbf16>, vector<4x256xf32> -> vector<4x256xf32>
    %59 = arith.addf %49, %58 : vector<4x256xf32>
    %c0_33 = arith.constant 0 : index
    %c16 = arith.constant 16 : index
    %60 = vector.load %arg7[%c0_33, %c16] : memref<4x290xf32, #tpu.memory_space<vmem>>, vector<4x256xf32>
    %cst_34 = arith.constant 0.000000e+00 : f32
    %61 = vector.shape_cast %32 : vector<1x256xi1> to vector<1x256xi1>
    %62 = vector.broadcast %61 : vector<1x256xi1> to vector<4x256xi1>
    %63 = vector.broadcast %cst_34 : f32 to vector<4x256xf32>
    %64 = arith.select %62, %60, %63 : vector<4x256xi1>, vector<4x256xf32>
    %c3 = arith.constant 3 : index
    %c0_35 = arith.constant 0 : index
    %c0_36 = arith.constant 0 : index
    %65 = vector.load %arg4[%c3, %c0_35, %c0_36] : memref<9x4x4xbf16, #tpu.memory_space<vmem>>, vector<1x4x4xbf16>
    %66 = vector.shape_cast %65 : vector<1x4x4xbf16> to vector<4x4xbf16>
    %67 = arith.truncf %64 : vector<4x256xf32> to vector<4x256xbf16>
    %cst_37 = arith.constant dense<0.000000e+00> : vector<4x256xf32>
    %68 = tpu.matmul %66, %67, %cst_37 {dimension_numbers = #tpu.dot_dimension_numbers<[1], [0], [0], [1], [0, 0, 1, 1], [], []>} : vector<4x4xbf16>, vector<4x256xbf16>, vector<4x256xf32> -> vector<4x256xf32>
    %69 = arith.addf %59, %68 : vector<4x256xf32>
    %c0_38 = arith.constant 0 : index
    %c17_39 = arith.constant 17 : index
    %70 = vector.load %arg7[%c0_38, %c17_39] : memref<4x290xf32, #tpu.memory_space<vmem>>, vector<4x256xf32>
    %c4 = arith.constant 4 : index
    %c0_40 = arith.constant 0 : index
    %c0_41 = arith.constant 0 : index
    %71 = vector.load %arg4[%c4, %c0_40, %c0_41] : memref<9x4x4xbf16, #tpu.memory_space<vmem>>, vector<1x4x4xbf16>
    %72 = vector.shape_cast %71 : vector<1x4x4xbf16> to vector<4x4xbf16>
    %73 = arith.truncf %70 : vector<4x256xf32> to vector<4x256xbf16>
    %cst_42 = arith.constant dense<0.000000e+00> : vector<4x256xf32>
    %74 = tpu.matmul %72, %73, %cst_42 {dimension_numbers = #tpu.dot_dimension_numbers<[1], [0], [0], [1], [0, 0, 1, 1], [], []>} : vector<4x4xbf16>, vector<4x256xbf16>, vector<4x256xf32> -> vector<4x256xf32>
    %75 = arith.addf %69, %74 : vector<4x256xf32>
    %c0_43 = arith.constant 0 : index
    %c18 = arith.constant 18 : index
    %76 = vector.load %arg7[%c0_43, %c18] : memref<4x290xf32, #tpu.memory_space<vmem>>, vector<4x256xf32>
    %cst_44 = arith.constant 0.000000e+00 : f32
    %77 = vector.shape_cast %34 : vector<1x256xi1> to vector<1x256xi1>
    %78 = vector.broadcast %77 : vector<1x256xi1> to vector<4x256xi1>
    %79 = vector.broadcast %cst_44 : f32 to vector<4x256xf32>
    %80 = arith.select %78, %76, %79 : vector<4x256xi1>, vector<4x256xf32>
    %c5 = arith.constant 5 : index
    %c0_45 = arith.constant 0 : index
    %c0_46 = arith.constant 0 : index
    %81 = vector.load %arg4[%c5, %c0_45, %c0_46] : memref<9x4x4xbf16, #tpu.memory_space<vmem>>, vector<1x4x4xbf16>
    %82 = vector.shape_cast %81 : vector<1x4x4xbf16> to vector<4x4xbf16>
    %83 = arith.truncf %80 : vector<4x256xf32> to vector<4x256xbf16>
    %cst_47 = arith.constant dense<0.000000e+00> : vector<4x256xf32>
    %84 = tpu.matmul %82, %83, %cst_47 {dimension_numbers = #tpu.dot_dimension_numbers<[1], [0], [0], [1], [0, 0, 1, 1], [], []>} : vector<4x4xbf16>, vector<4x256xbf16>, vector<4x256xf32> -> vector<4x256xf32>
    %85 = arith.addf %75, %84 : vector<4x256xf32>
    %c0_48 = arith.constant 0 : index
    %c32 = arith.constant 32 : index
    %86 = vector.load %arg7[%c0_48, %c32] : memref<4x290xf32, #tpu.memory_space<vmem>>, vector<4x256xf32>
    %cst_49 = arith.constant 0.000000e+00 : f32
    %87 = vector.shape_cast %32 : vector<1x256xi1> to vector<1x256xi1>
    %88 = vector.broadcast %87 : vector<1x256xi1> to vector<4x256xi1>
    %89 = vector.broadcast %cst_49 : f32 to vector<4x256xf32>
    %90 = arith.select %88, %86, %89 : vector<4x256xi1>, vector<4x256xf32>
    %c6 = arith.constant 6 : index
    %c0_50 = arith.constant 0 : index
    %c0_51 = arith.constant 0 : index
    %91 = vector.load %arg4[%c6, %c0_50, %c0_51] : memref<9x4x4xbf16, #tpu.memory_space<vmem>>, vector<1x4x4xbf16>
    %92 = vector.shape_cast %91 : vector<1x4x4xbf16> to vector<4x4xbf16>
    %93 = arith.truncf %90 : vector<4x256xf32> to vector<4x256xbf16>
    %cst_52 = arith.constant dense<0.000000e+00> : vector<4x256xf32>
    %94 = tpu.matmul %92, %93, %cst_52 {dimension_numbers = #tpu.dot_dimension_numbers<[1], [0], [0], [1], [0, 0, 1, 1], [], []>} : vector<4x4xbf16>, vector<4x256xbf16>, vector<4x256xf32> -> vector<4x256xf32>
    %95 = arith.addf %85, %94 : vector<4x256xf32>
    %c0_53 = arith.constant 0 : index
    %c33 = arith.constant 33 : index
    %96 = vector.load %arg7[%c0_53, %c33] : memref<4x290xf32, #tpu.memory_space<vmem>>, vector<4x256xf32>
    %c7 = arith.constant 7 : index
    %c0_54 = arith.constant 0 : index
    %c0_55 = arith.constant 0 : index
    %97 = vector.load %arg4[%c7, %c0_54, %c0_55] : memref<9x4x4xbf16, #tpu.memory_space<vmem>>, vector<1x4x4xbf16>
    %98 = vector.shape_cast %97 : vector<1x4x4xbf16> to vector<4x4xbf16>
    %99 = arith.truncf %96 : vector<4x256xf32> to vector<4x256xbf16>
    %cst_56 = arith.constant dense<0.000000e+00> : vector<4x256xf32>
    %100 = tpu.matmul %98, %99, %cst_56 {dimension_numbers = #tpu.dot_dimension_numbers<[1], [0], [0], [1], [0, 0, 1, 1], [], []>} : vector<4x4xbf16>, vector<4x256xbf16>, vector<4x256xf32> -> vector<4x256xf32>
    %101 = arith.addf %95, %100 : vector<4x256xf32>
    %c0_57 = arith.constant 0 : index
    %c34 = arith.constant 34 : index
    %102 = vector.load %arg7[%c0_57, %c34] : memref<4x290xf32, #tpu.memory_space<vmem>>, vector<4x256xf32>
    %cst_58 = arith.constant 0.000000e+00 : f32
    %103 = vector.shape_cast %34 : vector<1x256xi1> to vector<1x256xi1>
    %104 = vector.broadcast %103 : vector<1x256xi1> to vector<4x256xi1>
    %105 = vector.broadcast %cst_58 : f32 to vector<4x256xf32>
    %106 = arith.select %104, %102, %105 : vector<4x256xi1>, vector<4x256xf32>
    %c8 = arith.constant 8 : index
    %c0_59 = arith.constant 0 : index
    %c0_60 = arith.constant 0 : index
    %107 = vector.load %arg4[%c8, %c0_59, %c0_60] : memref<9x4x4xbf16, #tpu.memory_space<vmem>>, vector<1x4x4xbf16>
    %108 = vector.shape_cast %107 : vector<1x4x4xbf16> to vector<4x4xbf16>
    %109 = arith.truncf %106 : vector<4x256xf32> to vector<4x256xbf16>
    %cst_61 = arith.constant dense<0.000000e+00> : vector<4x256xf32>
    %110 = tpu.matmul %108, %109, %cst_61 {dimension_numbers = #tpu.dot_dimension_numbers<[1], [0], [0], [1], [0, 0, 1, 1], [], []>} : vector<4x4xbf16>, vector<4x256xbf16>, vector<4x256xf32> -> vector<4x256xf32>
    %111 = arith.addf %101, %110 : vector<4x256xf32>
    %c0_62 = arith.constant 0 : index
    %c0_63 = arith.constant 0 : index
    %c0_64 = arith.constant 0 : index
    %112 = vector.load %arg5[%c0_62, %c0_63, %c0_64] : memref<1x4x256xf32, #tpu.memory_space<vmem>>, vector<1x4x256xf32>
    %113 = vector.shape_cast %112 : vector<1x4x256xf32> to vector<4x256xf32>
    %114 = vector.shape_cast %111 : vector<4x256xf32> to vector<1x4x256xf32>
    tpu.vector_store %arg5[%c0_62, %c0_63, %c0_64], %114 {strides = array<i32>} : memref<1x4x256xf32, #tpu.memory_space<vmem>>, vector<1x4x256xf32>,
    %cst_65 = arith.constant dense<0.000000e+00> : vector<4xf32>
    %115 = vector.multi_reduction <add>, %111, %cst_65 [1] : vector<4x256xf32> to vector<4xf32>
    %116 = vector.shape_cast %115 : vector<4xf32> to vector<4x1xf32>
    %117 = arith.mulf %111, %111 : vector<4x256xf32>
    %cst_66 = arith.constant dense<0.000000e+00> : vector<4xf32>
    %118 = vector.multi_reduction <add>, %117, %cst_66 [1] : vector<4x256xf32> to vector<4xf32>
    %119 = vector.shape_cast %118 : vector<4xf32> to vector<4x1xf32>
    %120 = tpu.concatenate %116, %119 in 1 : vector<4x1xf32>, vector<4x1xf32> -> vector<4x2xf32>
    %c0_67 = arith.constant 0 : index
    %c0_68 = arith.constant 0 : index
    %c0_69 = arith.constant 0 : index
    %121 = vector.load %arg6[%c0_67, %c0_68, %c0_69] : memref<1x4x2xf32, #tpu.memory_space<vmem>>, vector<1x4x2xf32>
    %122 = vector.shape_cast %121 : vector<1x4x2xf32> to vector<4x2xf32>
    %123 = vector.shape_cast %120 : vector<4x2xf32> to vector<1x4x2xf32>
    tpu.vector_store %arg6[%c0_67, %c0_68, %c0_69], %123 {strides = array<i32>} : memref<1x4x2xf32, #tpu.memory_space<vmem>>, vector<1x4x2xf32>,
    return
  }
  func.func @transform_0(%arg0: i32) -> (i32, i32, i32) {
    %c0_i32 = arith.constant 0 : i32
    %c0_i32_0 = arith.constant 0 : i32
    %c0_i32_1 = arith.constant 0 : i32
    return %arg0, %c0_i32, %c0_i32_0 : i32, i32, i32
  }
  func.func @transform_1(%arg0: i32) -> (i32, i32) {
    %c0_i32 = arith.constant 0 : i32
    %c0_i32_0 = arith.constant 0 : i32
    %c0_i32_1 = arith.constant 0 : i32
    return %c0_i32, %c0_i32_0 : i32, i32
  }
  func.func @transform_2(%arg0: i32) -> (i32, i32) {
    %c0_i32 = arith.constant 0 : i32
    %c0_i32_0 = arith.constant 0 : i32
    %c0_i32_1 = arith.constant 0 : i32
    return %c0_i32, %c0_i32_0 : i32, i32
  }
  func.func @transform_3(%arg0: i32) -> (i32, i32, i32) {
    %c0_i32 = arith.constant 0 : i32
    %c0_i32_0 = arith.constant 0 : i32
    %c0_i32_1 = arith.constant 0 : i32
    %c0_i32_2 = arith.constant 0 : i32
    return %c0_i32, %c0_i32_0, %c0_i32_1 : i32, i32, i32
  }
  func.func @transform_4(%arg0: i32) -> (i32, i32, i32) {
    %c0_i32 = arith.constant 0 : i32
    %c0_i32_0 = arith.constant 0 : i32
    %c0_i32_1 = arith.constant 0 : i32
    return %arg0, %c0_i32, %c0_i32_0 : i32, i32, i32
  }
  func.func @transform_5(%arg0: i32) -> (i32, i32, i32) {
    %c0_i32 = arith.constant 0 : i32
    %c0_i32_0 = arith.constant 0 : i32
    %c0_i32_1 = arith.constant 0 : i32
    return %arg0, %c0_i32, %c0_i32_0 : i32, i32, i32
  }
}

</mosaic_0001>

<llo_original>
// kernel: basic_block_forward.5
$region0: #{basic_block_forward.5}
  #allocation0 [shape = 'u32[]', space=smem, size = 0x4, offset = 0x4, fixed_abs, tag = 'smem constant byte address 0x4 - core index']
  #allocation1 [shape = 'u32[72,128]{1,0:T(1,128)}', space=vmem, size = 0x9000, scoped, tag = 'internal scratch']
  %s0 = inlined_call_operand.vmem [shape: f32[2,4,256], index: 0, kind: input, shape index: {}]
  %s1 = inlined_call_operand.vmem [shape: f32[2,4,256], index: 1, kind: input, shape index: {}]
  %s2 = inlined_call_operand.vmem [shape: f32[4,1], index: 2, kind: input, shape index: {}]
  %s3 = inlined_call_operand.vmem [shape: f32[4,1], index: 3, kind: input, shape index: {}]
  %s4 = inlined_call_operand.vmem [shape: f32[2,4,256], index: 4, kind: output, shape index: {}]
  %s5 = sld [smem:[#allocation0]]
  $region49: #{basic_block_forward.5} parent=0
    _
  %s7 = ssub.s32 1, %s5
  %s8 = scalar_select 0, %s7, %s5
  loop: start=0, step=1, limit=4
  $region2: #{basic_block_forward.5} parent=0 // loop_pre_header
    _
  $region3: #{basic_block_forward.5} parent=0 // loop_header
    %s10 = sphi 0, %s14
    %p11 = scmp.ge.s32.totalorder %s10, 4
    %s20 = sphi 0, %s22
    %s23 = sphi 0, %s20
    %s24 = sphi 0, %s23
    %s40 = sphi 0, %s24
    %s46 = sphi 0, %s48
    %s49 = sphi 0, %s46
    %s50 = sphi 0, %s49
    %s66 = sphi 0, %s50
    %s70 = sphi 0, %s70
    %s72 = sphi 0, %s70
    %s73 = sphi 0, %s72
    %s87 = sphi 0, %s73
    %s91 = sphi 0, %s91
    %s93 = sphi 0, %s91
    %s94 = sphi 0, %s93
    %s108 = sphi 0, %s94
    %s114 = sphi 0, %s116
    %s117 = sphi 0, %s114
    %s118 = sphi 0, %s117
    %s134 = sphi 0, %s118
  $region4: #{basic_block_forward.5} parent=0 // loop_header_branch
    %13 = sbr.rel (%p11) target = $region8
  $region5: #{basic_block_forward.5} parent=0 // loop_body
    %s15 = ssub.s32 %s10, 1
    %s16 = ssub.s32 %s10, 2
    %s17 = sadd.s32 %s10, 1
    %s18 = ssub.s32 %s10, %s17
    %p19 = scmp.eq.s32.totalorder %s18, 0
    %s21 = sadd.s32 %s20, 1
    %s22 = scalar_select %p19, %s20, %s21
    %p25 = pneg %p19
    %p26 = scmp.eq.s32.totalorder %s10, 1
    %p27 = por %p25, %p26
    %p28 = scmp.ne.s32.totalorder %s20, %s23
    %p29 = scmp.eq.s32.totalorder %s10, 0
    %p30 = por %p28, %p29
    %p31 = scmp.ne.s32.totalorder %s20, %s23
    %p32 = scmp.eq.s32.totalorder %s15, 1
    %p33 = por %p31, %p32
    %p34 = scmp.ne.s32.totalorder %s23, %s24
    %p35 = scmp.eq.s32.totalorder %s15, 0
    %p36 = por %p34, %p35
    %p37 = scmp.ne.s32.totalorder %s23, %s24
    %p38 = scmp.eq.s32.totalorder %s16, 1
    %p39 = por %p37, %p38
    %p41 = scmp.ne.s32.totalorder %s24, %s40
    %p42 = scmp.eq.s32.totalorder %s16, 0
    %p43 = por %p41, %p42
    %s44 = ssub.s32 %s10, %s17
    %p45 = scmp.eq.s32.totalorder %s44, 0
    %s47 = sadd.s32 %s46, 1
    %s48 = scalar_select %p45, %s46, %s47
    %p51 = pneg %p45
    %p52 = scmp.eq.s32.totalorder %s10, 1
    %p53 = por %p51, %p52
    %p54 = scmp.ne.s32.totalorder %s46, %s49
    %p55 = scmp.eq.s32.totalorder %s10, 0
    %p56 = por %p54, %p55
    %p57 = scmp.ne.s32.totalorder %s46, %s49
    %p58 = scmp.eq.s32.totalorder %s15, 1
    %p59 = por %p57, %p58
    %p60 = scmp.ne.s32.totalorder %s49, %s50
    %p61 = scmp.eq.s32.totalorder %s15, 0
    %p62 = por %p60, %p61
    %p63 = scmp.ne.s32.totalorder %s49, %s50
    %p64 = scmp.eq.s32.totalorder %s16, 1
    %p65 = por %p63, %p64
    %p67 = scmp.ne.s32.totalorder %s50, %s66
    %p68 = scmp.eq.s32.totalorder %s16, 0
    %p69 = por %p67, %p68
    %s71 = sadd.s32 %s70, 1
    %p74 = scmp.eq.s32.totalorder %s10, 1
    %p75 = scmp.ne.s32.totalorder %s70, %s72
    %p76 = scmp.eq.s32.totalorder %s10, 0
    %p77 = por %p75, %p76
    %p78 = scmp.ne.s32.totalorder %s70, %s72
    %p79 = scmp.eq.s32.totalorder %s15, 1
    %p80 = por %p78, %p79
    %p81 = scmp.ne.s32.totalorder %s72, %s73
    %p82 = scmp.eq.s32.totalorder %s15, 0
    %p83 = por %p81, %p82
    %p84 = scmp.ne.s32.totalorder %s72, %s73
    %p85 = scmp.eq.s32.totalorder %s16, 1
    %p86 = por %p84, %p85
    %p88 = scmp.ne.s32.totalorder %s73, %s87
    %p89 = scmp.eq.s32.totalorder %s16, 0
    %p90 = por %p88, %p89
    %s92 = sadd.s32 %s91, 1
    %p95 = scmp.eq.s32.totalorder %s10, 1
    %p96 = scmp.ne.s32.totalorder %s91, %s93
    %p97 = scmp.eq.s32.totalorder %s10, 0
    %p98 = por %p96, %p97
    %p99 = scmp.ne.s32.totalorder %s91, %s93
    %p100 = scmp.eq.s32.totalorder %s15, 1
    %p101 = por %p99, %p100
    %p102 = scmp.ne.s32.totalorder %s93, %s94
    %p103 = scmp.eq.s32.totalorder %s15, 0
    %p104 = por %p102, %p103
    %p105 = scmp.ne.s32.totalorder %s93, %s94
    %p106 = scmp.eq.s32.totalorder %s16, 1
    %p107 = por %p105, %p106
    %p109 = scmp.ne.s32.totalorder %s94, %s108
    %p110 = scmp.eq.s32.totalorder %s16, 0
    %p111 = por %p109, %p110
    %s112 = ssub.s32 %s10, %s17
    %p113 = scmp.eq.s32.totalorder %s112, 0
    %s115 = sadd.s32 %s114, 1
    %s116 = scalar_select %p113, %s114, %s115
    %p119 = pneg %p113
    %p120 = scmp.eq.s32.totalorder %s10, 1
    %p121 = por %p119, %p120
    %p122 = scmp.ne.s32.totalorder %s114, %s117
    %p123 = scmp.eq.s32.totalorder %s10, 0
    %p124 = por %p122, %p123
    %p125 = scmp.ne.s32.totalorder %s114, %s117
    %p126 = scmp.eq.s32.totalorder %s15, 1
    %p127 = por %p125, %p126
    %p128 = scmp.ne.s32.totalorder %s117, %s118
    %p129 = scmp.eq.s32.totalorder %s15, 0
    %p130 = por %p128, %p129
    %p131 = scmp.ne.s32.totalorder %s117, %s118
    %p132 = scmp.eq.s32.totalorder %s16, 1
    %p133 = por %p131, %p132
    %p135 = scmp.ne.s32.totalorder %s118, %s134
    %p136 = scmp.eq.s32.totalorder %s16, 0
    %p137 = por %p135, %p136
    %p138 = scmp.le.s32.totalorder 1, %s10
    %p139 = scmp.lt.s32.totalorder %s10, 3
    %p140 = pnand %p138, %p139
    %p141 = pneg %p140
    // Predicated region
    $region9: #{basic_block_forward.5} parent=5 // pred_check
      _
    $region10: #{basic_block_forward.5} parent=5 // pred_check_branch
      %143 = sbr.rel (%p140) target = $region12
    $region11: #{basic_block_forward.5} parent=5 // pred_region
      %s144 = ssub.s32 %s10, 1
      // Predicated region
      $region13: #{basic_block_forward.5} parent=11 // pred_check
        %p145 = pneg %p83
      $region14: #{basic_block_forward.5} parent=11 // pred_check_branch
        %147 = sbr.rel (%p145) target = $region16
      $region15: #{basic_block_forward.5} parent=11 // pred_region
        _
      $region16: #{basic_block_forward.5} parent=11 // pred_fallthru
        _
      // Predicated region
      $region17: #{basic_block_forward.5} parent=11 // pred_check
        %p148 = pneg %p104
      $region18: #{basic_block_forward.5} parent=11 // pred_check_branch
        %150 = sbr.rel (%p148) target = $region20
      $region19: #{basic_block_forward.5} parent=11 // pred_region
        _
      $region20: #{basic_block_forward.5} parent=11 // pred_fallthru
        _
    $region12: #{basic_block_forward.5} parent=5 // pred_fallthru
      _
    %p151 = scmp.lt.s32.totalorder %s10, 2
    // Predicated region
    $region21: #{basic_block_forward.5} parent=5 // pred_check
      %p152 = pneg %p151
    $region22: #{basic_block_forward.5} parent=5 // pred_check_branch
      %154 = sbr.rel (%p152) target = $region24
    $region23: #{basic_block_forward.5} parent=5 // pred_region
      // Predicated region
      $region25: #{basic_block_forward.5} parent=23 // pred_check
        %p155 = pneg %p30
      $region26: #{basic_block_forward.5} parent=23 // pred_check_branch
        %157 = sbr.rel (%p155) target = $region28
      $region27: #{basic_block_forward.5} parent=23 // pred_region
        %p158 = scmp.lt.s32.totalorder %s10, 1
        %s159 = scalar_select %p158, %s10, 1
        %s160 = smul.addr %s159, 2
        %s161 = smul.addr %s160, 4
        %s162 = scalar_lea.vmem %s0, %s161
      $region28: #{basic_block_forward.5} parent=23 // pred_fallthru
        _
      // Predicated region
      $region29: #{basic_block_forward.5} parent=23 // pred_check
        %p163 = pneg %p56
      $region30: #{basic_block_forward.5} parent=23 // pred_check_branch
        %165 = sbr.rel (%p163) target = $region32
      $region31: #{basic_block_forward.5} parent=23 // pred_region
        %p166 = scmp.lt.s32.totalorder %s10, 1
        %s167 = scalar_select %p166, %s10, 1
        %s168 = smul.addr %s167, 2
        %s169 = smul.addr %s168, 4
        %s170 = scalar_lea.vmem %s1, %s169
      $region32: #{basic_block_forward.5} parent=23 // pred_fallthru
        _
    $region24: #{basic_block_forward.5} parent=5 // pred_fallthru
      _
    %p171 = scmp.le.s32.totalorder 1, %s10
    %p172 = scmp.lt.s32.totalorder %s10, 3
    %p173 = pnand %p171, %p172
    %p174 = pneg %p173
    // Predicated region
    $region33: #{basic_block_forward.5} parent=5 // pred_check
      _
    $region34: #{basic_block_forward.5} parent=5 // pred_check_branch
      %176 = sbr.rel (%p173) target = $region36
    $region35: #{basic_block_forward.5} parent=5 // pred_region
      %s177 = ssub.s32 %s10, 1
      %p178 = scmp.lt.s32.totalorder %s15, 1
      %s179 = scalar_select %p178, %s15, 1
      %s180 = smul.addr %s179, 2
      %s181 = smul.addr %s180, 4
      %s182 = scalar_lea.vmem %s0, %s181
      %p183 = pneg %p36
      %p184 = pneg %p33
      %p185 = scmp.lt.s32.totalorder %s15, 1
      %s186 = scalar_select %p185, %s15, 1
      %s187 = smul.addr %s186, 2
      %s188 = smul.addr %s187, 4
      %s189 = scalar_lea.vmem %s1, %s188
      %p190 = pneg %p62
      %p191 = pneg %p59
      %p192 = pneg %p83
      %p193 = pneg %p80
      %p194 = pneg %p104
      %p195 = pneg %p101
      %p196 = pneg %p130
      %p197 = pneg %p127
      %p198 = scmp.lt.s32.totalorder %s15, 1
      %s199 = scalar_select %p198, %s15, 1
      %s200 = smul.addr %s199, 2
      %s201 = smul.addr %s200, 4
      %s202 = scalar_lea.vmem %s4, %s201
      %p203 = scmp.lt.s32.totalorder %s15, 1
      %s204 = scalar_select %p203, %s15, 1
      %s205 = smul.addr %s204, 2
      %s206 = smul.addr %s205, 4
      %s207 = scalar_lea.vmem %s0, %s206
      %p208 = scmp.lt.s32.totalorder %s15, 1
      %s209 = scalar_select %p208, %s15, 1
      %s210 = smul.addr %s209, 2
      %s211 = smul.addr %s210, 4
      %s212 = scalar_lea.vmem %s1, %s211
      %p213 = scmp.lt.s32.totalorder %s15, 1
      %s214 = scalar_select %p213, %s15, 1
      %s215 = smul.addr %s214, 2
      %s216 = smul.addr %s215, 4
      %s217 = scalar_lea.vmem %s4, %s216
      %v218 = vld [vmem:[%s207] sm:$0xff]
      %v219 = vld [vmem:[%s2] sm:$0xf]
      %221 = vset.pattern.permute.xlu0 0
      %222 = vperm.xlu0 %221, %v219
      %v223 = vpop.permute.xlu0 %222
      %v225 = vunpack.c.l.s4 839922192
      %v226 = vunpack.c.0.s8 %v225
      %v227 = vperm.slane %v223, %v226
      %v229 = vmul.f32 %v218, %v227
      %v230 = vld [vmem:[%s3] sm:$0xf]
      %232 = vset.pattern.permute.xlu0 0
      %233 = vperm.xlu0 %232, %v230
      %v234 = vpop.permute.xlu0 %233
      %v236 = vunpack.c.l.s4 839922192
      %v237 = vunpack.c.0.s8 %v236
      %v238 = vperm.slane %v234, %v237
      %v240 = vadd.f32 %v229, %v238
      %v241 = vld [vmem:[%s212] sm:$0xff]
      %v242 = vadd.f32 %v240, %v241
      %v243 = vmax.f32 %v242, 0.0
      %244 = vst [vmem:[%s217] sm:$0xff] %v243
      %p245 = scmp.lt.s32.totalorder %s15, 1
      %s246 = scalar_select %p245, %s15, 1
      %s247 = smul.addr %s246, 2
      %s248 = smul.addr %s247, 4
      %s249 = scalar_lea.vmem %s4, %s248
      // Predicated region
      $region37: #{basic_block_forward.5} parent=35 // pred_check
        %p250 = pneg %p127
      $region38: #{basic_block_forward.5} parent=35 // pred_check_branch
        %252 = sbr.rel (%p250) target = $region40
      $region39: #{basic_block_forward.5} parent=35 // pred_region
        _
      $region40: #{basic_block_forward.5} parent=35 // pred_fallthru
        _
    $region36: #{basic_block_forward.5} parent=5 // pred_fallthru
      _
    %p253 = scmp.le.s32.totalorder 2, %s10
    // Predicated region
    $region41: #{basic_block_forward.5} parent=5 // pred_check
      %p254 = pneg %p253
    $region42: #{basic_block_forward.5} parent=5 // pred_check_branch
      %256 = sbr.rel (%p254) target = $region44
    $region43: #{basic_block_forward.5} parent=5 // pred_region
      %s257 = ssub.s32 %s10, 2
      // Predicated region
      $region45: #{basic_block_forward.5} parent=43 // pred_check
        %p258 = pneg %p133
      $region46: #{basic_block_forward.5} parent=43 // pred_check_branch
        %260 = sbr.rel (%p258) target = $region48
      $region47: #{basic_block_forward.5} parent=43 // pred_region
        %p261 = scmp.lt.s32.totalorder %s16, 1
        %s262 = scalar_select %p261, %s16, 1
        %s263 = smul.addr %s262, 2
        %s264 = smul.addr %s263, 4
        %s265 = scalar_lea.vmem %s4, %s264
      $region48: #{basic_block_forward.5} parent=43 // pred_fallthru
        _
    $region44: #{basic_block_forward.5} parent=5 // pred_fallthru
      _
  $region6: #{basic_block_forward.5} parent=0 // loop_footer
    %s14 = sadd.s32 1, %s10
  $region7: #{basic_block_forward.5} parent=0 // loop_footer_branch
    %9 = sbr.rel target = $region3
  $region8: #{basic_block_forward.5} parent=0 // loop_exit
    _

// kernel: basic_block_forward.3
$region0: #{basic_block_forward.3}
  #allocation0 [shape = 'u32[]', space=smem, size = 0x4, offset = 0x4, fixed_abs, tag = 'smem constant byte address 0x4 - core index']
  #allocation1 [shape = 'u32[72,128]{1,0:T(1,128)}', space=vmem, size = 0x9000, scoped, tag = 'internal scratch']
  #allocation2 [shape = 'f32[4,290]{1,0:T(4,128)}', space=vmem, size = 0x1800, scoped, tag = 'scratch operand']
  %s0 = inlined_call_operand.vmem [shape: f32[2,4,256], index: 0, kind: input, shape index: {}]
  %s1 = inlined_call_operand.vmem [shape: bf16[9,4,4], index: 1, kind: input, shape index: {}]
  %s2 = inlined_call_operand.vmem [shape: f32[2,4,256], index: 2, kind: output, shape index: {0}]
  %s3 = inlined_call_operand.vmem [shape: f32[2,4,2], index: 3, kind: output, shape index: {1}]
  %4 = xla_tuple %s2, %s3
  %s5 = sld [smem:[#allocation0]]
  $region49: #{basic_block_forward.3} parent=0
    _
  %s7 = ssub.s32 1, %s5
  %s8 = scalar_select 0, %s7, %s5
  loop: start=0, step=1, limit=4
  $region2: #{basic_block_forward.3} parent=0 // loop_pre_header
    _
  $region3: #{basic_block_forward.3} parent=0 // loop_header
    %s10 = sphi 0, %s14
    %p11 = scmp.ge.s32.totalorder %s10, 4
    %s20 = sphi 0, %s22
    %s23 = sphi 0, %s20
    %s24 = sphi 0, %s23
    %s40 = sphi 0, %s24
    %s44 = sphi 0, %s44
    %s46 = sphi 0, %s44
    %s47 = sphi 0, %s46
    %s61 = sphi 0, %s47
    %s67 = sphi 0, %s69
    %s70 = sphi 0, %s67
    %s71 = sphi 0, %s70
    %s87 = sphi 0, %s71
    %s93 = sphi 0, %s95
    %s96 = sphi 0, %s93
    %s97 = sphi 0, %s96
    %s113 = sphi 0, %s97
  $region4: #{basic_block_forward.3} parent=0 // loop_header_branch
    %13 = sbr.rel (%p11) target = $region8
  $region5: #{basic_block_forward.3} parent=0 // loop_body
    %s15 = ssub.s32 %s10, 1
    %s16 = ssub.s32 %s10, 2
    %s17 = sadd.s32 %s10, 1
    %s18 = ssub.s32 %s10, %s17
    %p19 = scmp.eq.s32.totalorder %s18, 0
    %s21 = sadd.s32 %s20, 1
    %s22 = scalar_select %p19, %s20, %s21
    %p25 = pneg %p19
    %p26 = scmp.eq.s32.totalorder %s10, 1
    %p27 = por %p25, %p26
    %p28 = scmp.ne.s32.totalorder %s20, %s23
    %p29 = scmp.eq.s32.totalorder %s10, 0
    %p30 = por %p28, %p29
    %p31 = scmp.ne.s32.totalorder %s20, %s23
    %p32 = scmp.eq.s32.totalorder %s15, 1
    %p33 = por %p31, %p32
    %p34 = scmp.ne.s32.totalorder %s23, %s24
    %p35 = scmp.eq.s32.totalorder %s15, 0
    %p36 = por %p34, %p35
    %p37 = scmp.ne.s32.totalorder %s23, %s24
    %p38 = scmp.eq.s32.totalorder %s16, 1
    %p39 = por %p37, %p38
    %p41 = scmp.ne.s32.totalorder %s24, %s40
    %p42 = scmp.eq.s32.totalorder %s16, 0
    %p43 = por %p41, %p42
    %s45 = sadd.s32 %s44, 1
    %p48 = scmp.eq.s32.totalorder %s10, 1
    %p49 = scmp.ne.s32.totalorder %s44, %s46
    %p50 = scmp.eq.s32.totalorder %s10, 0
    %p51 = por %p49, %p50
    %p52 = scmp.ne.s32.totalorder %s44, %s46
    %p53 = scmp.eq.s32.totalorder %s15, 1
    %p54 = por %p52, %p53
    %p55 = scmp.ne.s32.totalorder %s46, %s47
    %p56 = scmp.eq.s32.totalorder %s15, 0
    %p57 = por %p55, %p56
    %p58 = scmp.ne.s32.totalorder %s46, %s47
    %p59 = scmp.eq.s32.totalorder %s16, 1
    %p60 = por %p58, %p59
    %p62 = scmp.ne.s32.totalorder %s47, %s61
    %p63 = scmp.eq.s32.totalorder %s16, 0
    %p64 = por %p62, %p63
    %s65 = ssub.s32 %s10, %s17
    %p66 = scmp.eq.s32.totalorder %s65, 0
    %s68 = sadd.s32 %s67, 1
    %s69 = scalar_select %p66, %s67, %s68
    %p72 = pneg %p66
    %p73 = scmp.eq.s32.totalorder %s10, 1
    %p74 = por %p72, %p73
    %p75 = scmp.ne.s32.totalorder %s67, %s70
    %p76 = scmp.eq.s32.totalorder %s10, 0
    %p77 = por %p75, %p76
    %p78 = scmp.ne.s32.totalorder %s67, %s70
    %p79 = scmp.eq.s32.totalorder %s15, 1
    %p80 = por %p78, %p79
    %p81 = scmp.ne.s32.totalorder %s70, %s71
    %p82 = scmp.eq.s32.totalorder %s15, 0
    %p83 = por %p81, %p82
    %p84 = scmp.ne.s32.totalorder %s70, %s71
    %p85 = scmp.eq.s32.totalorder %s16, 1
    %p86 = por %p84, %p85
    %p88 = scmp.ne.s32.totalorder %s71, %s87
    %p89 = scmp.eq.s32.totalorder %s16, 0
    %p90 = por %p88, %p89
    %s91 = ssub.s32 %s10, %s17
    %p92 = scmp.eq.s32.totalorder %s91, 0
    %s94 = sadd.s32 %s93, 1
    %s95 = scalar_select %p92, %s93, %s94
    %p98 = pneg %p92
    %p99 = scmp.eq.s32.totalorder %s10, 1
    %p100 = por %p98, %p99
    %p101 = scmp.ne.s32.totalorder %s93, %s96
    %p102 = scmp.eq.s32.totalorder %s10, 0
    %p103 = por %p101, %p102
    %p104 = scmp.ne.s32.totalorder %s93, %s96
    %p105 = scmp.eq.s32.totalorder %s15, 1
    %p106 = por %p104, %p105
    %p107 = scmp.ne.s32.totalorder %s96, %s97
    %p108 = scmp.eq.s32.totalorder %s15, 0
    %p109 = por %p107, %p108
    %p110 = scmp.ne.s32.totalorder %s96, %s97
    %p111 = scmp.eq.s32.totalorder %s16, 1
    %p112 = por %p110, %p111
    %p114 = scmp.ne.s32.totalorder %s97, %s113
    %p115 = scmp.eq.s32.totalorder %s16, 0
    %p116 = por %p114, %p115
    %p117 = scmp.le.s32.totalorder 1, %s10
    %p118 = scmp.lt.s32.totalorder %s10, 3
    %p119 = pnand %p117, %p118
    %p120 = pneg %p119
    // Predicated region
    $region9: #{basic_block_forward.3} parent=5 // pred_check
      _
    $region10: #{basic_block_forward.3} parent=5 // pred_check_branch
      %122 = sbr.rel (%p119) target = $region12
    $region11: #{basic_block_forward.3} parent=5 // pred_region
      %s123 = ssub.s32 %s10, 1
      // Predicated region
      $region13: #{basic_block_forward.3} parent=11 // pred_check
        %p124 = pneg %p57
      $region14: #{basic_block_forward.3} parent=11 // pred_check_branch
        %126 = sbr.rel (%p124) target = $region16
      $region15: #{basic_block_forward.3} parent=11 // pred_region
        _
      $region16: #{basic_block_forward.3} parent=11 // pred_fallthru
        _
    $region12: #{basic_block_forward.3} parent=5 // pred_fallthru
      _
    %p127 = scmp.lt.s32.totalorder %s10, 2
    // Predicated region
    $region17: #{basic_block_forward.3} parent=5 // pred_check
      %p128 = pneg %p127
    $region18: #{basic_block_forward.3} parent=5 // pred_check_branch
      %130 = sbr.rel (%p128) target = $region20
    $region19: #{basic_block_forward.3} parent=5 // pred_region
      // Predicated region
      $region21: #{basic_block_forward.3} parent=19 // pred_check
        %p131 = pneg %p30
      $region22: #{basic_block_forward.3} parent=19 // pred_check_branch
        %133 = sbr.rel (%p131) target = $region24
      $region23: #{basic_block_forward.3} parent=19 // pred_region
        %p134 = scmp.lt.s32.totalorder %s10, 1
        %s135 = scalar_select %p134, %s10, 1
        %s136 = smul.addr %s135, 2
        %s137 = smul.addr %s136, 4
        %s138 = scalar_lea.vmem %s0, %s137
      $region24: #{basic_block_forward.3} parent=19 // pred_fallthru
        _
    $region20: #{basic_block_forward.3} parent=5 // pred_fallthru
      _
    %p139 = scmp.le.s32.totalorder 1, %s10
    %p140 = scmp.lt.s32.totalorder %s10, 3
    %p141 = pnand %p139, %p140
    %p142 = pneg %p141
    // Predicated region
    $region25: #{basic_block_forward.3} parent=5 // pred_check
      _
    $region26: #{basic_block_forward.3} parent=5 // pred_check_branch
      %144 = sbr.rel (%p141) target = $region28
    $region27: #{basic_block_forward.3} parent=5 // pred_region
      %s145 = ssub.s32 %s10, 1
      %p146 = scmp.lt.s32.totalorder %s15, 1
      %s147 = scalar_select %p146, %s15, 1
      %s148 = smul.addr %s147, 2
      %s149 = smul.addr %s148, 4
      %s150 = scalar_lea.vmem %s0, %s149
      %p151 = pneg %p36
      %p152 = pneg %p33
      %p153 = pneg %p57
      %p154 = pneg %p54
      %p155 = pneg %p83
      %p156 = pneg %p80
      %p157 = scmp.lt.s32.totalorder %s15, 1
      %s158 = scalar_select %p157, %s15, 1
      %s159 = smul.addr %s158, 2
      %s160 = smul.addr %s159, 4
      %s161 = scalar_lea.vmem %s2, %s160
      %p162 = pneg %p109
      %p163 = pneg %p106
      %p164 = scmp.lt.s32.totalorder %s15, 1
      %s165 = scalar_select %p164, %s15, 1
      %s166 = smul.addr %s165, 4
      %s167 = scalar_lea.vmem %s3, %s166
      %p168 = scmp.lt.s32.totalorder %s15, 1
      %s169 = scalar_select %p168, %s15, 1
      %s170 = smul.addr %s169, 2
      %s171 = smul.addr %s170, 4
      %s172 = scalar_lea.vmem %s0, %s171
      %p173 = scmp.lt.s32.totalorder %s15, 1
      %s174 = scalar_select %p173, %s15, 1
      %s175 = smul.addr %s174, 2
      %s176 = smul.addr %s175, 4
      %s177 = scalar_lea.vmem %s2, %s176
      %p178 = scmp.lt.s32.totalorder %s15, 1
      %s179 = scalar_select %p178, %s15, 1
      %s180 = smul.addr %s179, 4
      %s181 = scalar_lea.vmem %s3, %s180
      %v183 = vld [vmem:[%s172] sm:$0xff]
      %vm184 = vcmask 134144
      %185 = vst.msk [vmem:[#allocation2] sm:$0xf] %vm184, 0.0
      %187 = vrot.lane.b32.xlu0 %v183, 17
      %v188 = vpop.permute.xlu0 %187
      %v189 = vrot.slane %v188, 4
      %vm190 = vcmask 138240
      %v191 = vsel %vm190, %v189, %v188
      %vm194 = vcmask 1043592
      %vm195 = vcmask 1047556
      %vm196 = vmor %vm195, %vm194
      %197 = vst.msk [vmem:[#allocation2] sm:$0xff] %vm196, %v191
      %198 = vst.msk [vmem:[#allocation2 + $0x8] sm:$0xf] %vm184, %v189
      %vm199 = vcmask 273544
      %200 = vst.msk [vmem:[#allocation2 + $0x8] sm:$0xf] %vm199, 0.0
      %v201 = vlaneseq
      %v202 = vand.u32 %v201, 127
      %v203 = vadd.s32 %v202, 128
      %vm204 = vcmp.lt.s32.totalorder %v202, 0
      %v205 = vsub.s32 0, %v202
      %v206 = vsel %vm204, %v205, %v202
      %v207 = vshrl.u32 %v206, 4
      %v208 = vand.u32 %v206, 15
      %v209 = vsub.s32 0, %v208
      %v210 = vsel %vm204, %v209, %v208
      %vm211 = vcmp.lt.s32.totalorder %v203, 0
      %v212 = vsub.s32 0, %v203
      %v213 = vsel %vm211, %v212, %v203
      %v214 = vshrl.u32 %v213, 4
      %v215 = vand.u32 %v213, 15
      %v216 = vsub.s32 0, %v215
      %v217 = vsel %vm211, %v216, %v215
      %vm218 = vcmp.ne.s32.totalorder %v210, 0
      %vm219 = vcmp.ne.s32.totalorder %v217, 0
      %vm220 = vcmp.lt.s32.totalorder %v210, 0
      %vm221 = vcmp.lt.s32.totalorder %v217, 0
      %vm222 = vmand %vm220, %vm218
      %vm223 = vmand %vm221, %vm219
      %v224 = vadd.s32 %v210, 16
      %v225 = vadd.s32 %v217, 16
      %v226 = vsel %vm222, %v224, %v210
      %v227 = vsel %vm223, %v225, %v217
      %vm228 = vcmp.ge.s32.totalorder %v226, 1
      %vm229 = vcmp.ge.s32.totalorder %v227, 1
      %vm230 = vcmp.le.s32.totalorder %v226, 14
      %vm231 = vcmp.le.s32.totalorder %v227, 14
      %v232 = vld [vmem:[#allocation2] sm:$0xff]
      %v233 = vsel %vm228, 1, 0
      %v234 = vsel %vm229, 1, 0
      %vm235 = vcmp.eq.s32.totalorder %v233, 1
      %vm236 = vcmp.eq.s32.totalorder %v234, 1
      %238 = vst [vmem:[#allocation1] ss:$2 sm:$0xff] %v232
      %v239 = vld.sshfl [vmem:[#allocation1] sm:$0xff pattern:$0x75316420]
      %v240 = vld.sshfl [vmem:[#allocation1 + $0x8] sm:$0xff pattern:$0x75316420]
      %v243 = vsel %vm235, %v239, 0.0
      %v244 = vsel %vm236, %v240, 0.0
      %v245 = vld [vmem:[%s1] sm:$0x3]
      %v246 = vpack.c.bf16 %v243, %v243
      %v247 = vpack.c.bf16 %v244, %v244
      %v248 = vld [vmem:[#allocation2] sm:$0xff]
      %v249 = vld [vmem:[#allocation2 + $0x8] sm:$0xf]
      %s250 = scalar_lea.vmem %s1, 2
      %v251 = vld [vmem:[%s250] sm:$0x3]
      %254 = vst [vmem:[#allocation1] ss:$2 sm:$0xff] %v248
      %s255 = scalar_lea.vmem [#allocation1], 16
      %256 = vst [vmem:[%s255] ss:$2 sm:$0xff] %v249
      %v257 = vld.sshfl [vmem:[#allocation1] sm:$0xff pattern:$0x75316420]
      %v258 = vld.sshfl [vmem:[#allocation1 + $0x8] sm:$0xff pattern:$0x75316420]
      %v259 = vld.sshfl [vmem:[#allocation1 + $0x10] sm:$0xff pattern:$0x75316420]
      %v263 = vpack.c.bf16 %v257, %v257
      %v264 = vpack.c.bf16 %v258, %v258
      %v265 = vpack.c.bf16 %v259, %v259
      %269 = vrot.lane.b32.xlu0 %v263, 127
      %v270 = vpop.permute.xlu0 %269
      %271 = vrot.lane.b32.xlu0 %v264, 127
      %v272 = vpop.permute.xlu0 %271
      %273 = vrot.lane.b32.xlu0 %v265, 127
      %v274 = vpop.permute.xlu0 %273
      %vm275 = vcmask 1039360
      %v276 = vsel %vm275, %v270, %v272
      %v277 = vsel %vm275, %v272, %v274
      %vm278 = vcmask 31744
      %v280 = vsel %vm278, %v251, 0
      %vm282 = vcmask 1041408
      %v284 = vsel %vm282, %v276, 0
      %v287 = vsel %vm282, %v277, 0
      %289 = vmatpush.bf16.msra.mxu0 0
      %290 = vmatpush.bf16.msra.mxu0 0
      %291 = vmatpush.bf16.msra.mxu0 0
      %292 = vmatpush.bf16.msra.mxu0 0
      %293 = vmatpush.bf16.msra.mxu0 0
      %294 = vmatpush.bf16.msra.mxu0 0
      %295 = vmatpush.bf16.msra.mxu0 0
      %296 = vmatpush.bf16.msra.mxu0 %v284
      %297 = vmatmul.bf16.gmra.mxu0 %v280
      %v298 = vpop.f32.mrf.mxu0
      %v299 = vadd.f32 0.0, %v298
      %v300 = vpop.f32.mrf.mxu0
      %301 = vdwg.mxu0
      %302 = vmatpush.bf16.msra.mxu0 0
      %303 = vmatpush.bf16.msra.mxu0 0
      %304 = vmatpush.bf16.msra.mxu0 0
      %305 = vmatpush.bf16.msra.mxu0 0
      %306 = vmatpush.bf16.msra.mxu0 0
      %307 = vmatpush.bf16.msra.mxu0 0
      %308 = vmatpush.bf16.msra.mxu0 0
      %309 = vmatpush.bf16.msra.mxu0 %v287
      %310 = vmatmul.bf16.gmra.mxu0 %v280
      %v311 = vpop.f32.mrf.mxu0
      %v312 = vadd.f32 0.0, %v311
      %v313 = vpop.f32.mrf.mxu0
      %314 = vdwg.mxu0
      %v316 = vsel %vm278, %v245, 0
      %v319 = vsel %vm282, %v246, 0
      %v322 = vsel %vm282, %v247, 0
      %324 = vmatpush.bf16.msra.mxu0 0
      %325 = vmatpush.bf16.msra.mxu0 0
      %326 = vmatpush.bf16.msra.mxu0 0
      %327 = vmatpush.bf16.msra.mxu0 0
      %328 = vmatpush.bf16.msra.mxu0 0
      %329 = vmatpush.bf16.msra.mxu0 0
      %330 = vmatpush.bf16.msra.mxu0 0
      %331 = vmatpush.bf16.msra.mxu0 %v319
      %332 = vmatmul.bf16.gmra.mxu0 %v316
      %v333 = vpop.f32.mrf.mxu0
      %v334 = vadd.f32 %v299, %v333
      %v335 = vpop.f32.mrf.mxu0
      %336 = vdwg.mxu0
      %337 = vmatpush.bf16.msra.mxu0 0
      %338 = vmatpush.bf16.msra.mxu0 0
      %339 = vmatpush.bf16.msra.mxu0 0
      %340 = vmatpush.bf16.msra.mxu0 0
      %341 = vmatpush.bf16.msra.mxu0 0
      %342 = vmatpush.bf16.msra.mxu0 0
      %343 = vmatpush.bf16.msra.mxu0 0
      %344 = vmatpush.bf16.msra.mxu0 %v322
      %345 = vmatmul.bf16.gmra.mxu0 %v316
      %v346 = vpop.f32.mrf.mxu0
      %v347 = vadd.f32 %v312, %v346
      %v348 = vpop.f32.mrf.mxu0
      %349 = vdwg.mxu0
      %v350 = vld [vmem:[#allocation2] sm:$0xff]
      %v351 = vld [vmem:[#allocation2 + $0x8] sm:$0xf]
      %v352 = vsel %vm230, 1, 0
      %v353 = vsel %vm231, 1, 0
      %vm354 = vcmp.eq.s32.totalorder %v352, 1
      %vm355 = vcmp.eq.s32.totalorder %v353, 1
      %358 = vst [vmem:[#allocation1] ss:$2 sm:$0xff] %v350
      %s359 = scalar_lea.vmem [#allocation1], 16
      %360 = vst [vmem:[%s359] ss:$2 sm:$0xff] %v351
      %v361 = vld.sshfl [vmem:[#allocation1] sm:$0xff pattern:$0x75316420]
      %v362 = vld.sshfl [vmem:[#allocation1 + $0x8] sm:$0xff pattern:$0x75316420]
      %v363 = vld.sshfl [vmem:[#allocation1 + $0x10] sm:$0xff pattern:$0x75316420]
      %364 = vrot.lane.b32.xlu0 %v361, 126
      %v365 = vpop.permute.xlu0 %364
      %366 = vrot.lane.b32.xlu0 %v362, 126
      %v367 = vpop.permute.xlu0 %366
      %368 = vrot.lane.b32.xlu0 %v363, 126
      %v369 = vpop.permute.xlu0 %368
      %vm370 = vcmask 1031168
      %v371 = vsel %vm370, %v365, %v367
      %v372 = vsel %vm370, %v367, %v369
      %v375 = vsel %vm354, %v371, 0.0
      %v376 = vsel %vm355, %v372, 0.0
      %s377 = scalar_lea.vmem %s1, 4
      %v378 = vld [vmem:[%s377] sm:$0x3]
      %v379 = vpack.c.bf16 %v375, %v375
      %v380 = vpack.c.bf16 %v376, %v376
      %v382 = vsel %vm278, %v378, 0
      %v385 = vsel %vm282, %v379, 0
      %v388 = vsel %vm282, %v380, 0
      %390 = vmatpush.bf16.msra.mxu0 0
      %391 = vmatpush.bf16.msra.mxu0 0
      %392 = vmatpush.bf16.msra.mxu0 0
      %393 = vmatpush.bf16.msra.mxu0 0
      %394 = vmatpush.bf16.msra.mxu0 0
      %395 = vmatpush.bf16.msra.mxu0 0
      %396 = vmatpush.bf16.msra.mxu0 0
      %397 = vmatpush.bf16.msra.mxu0 %v385
      %398 = vmatmul.bf16.gmra.mxu0 %v382
      %v399 = vpop.f32.mrf.mxu0
      %v400 = vadd.f32 0.0, %v399
      %v401 = vpop.f32.mrf.mxu0
      %402 = vdwg.mxu0
      %403 = vmatpush.bf16.msra.mxu0 0
      %404 = vmatpush.bf16.msra.mxu0 0
      %405 = vmatpush.bf16.msra.mxu0 0
      %406 = vmatpush.bf16.msra.mxu0 0
      %407 = vmatpush.bf16.msra.mxu0 0
      %408 = vmatpush.bf16.msra.mxu0 0
      %409 = vmatpush.bf16.msra.mxu0 0
      %410 = vmatpush.bf16.msra.mxu0 %v388
      %411 = vmatmul.bf16.gmra.mxu0 %v382
      %v412 = vpop.f32.mrf.mxu0
      %v413 = vadd.f32 0.0, %v412
      %v414 = vpop.f32.mrf.mxu0
      %415 = vdwg.mxu0
      %v416 = vadd.f32 %v334, %v400
      %v417 = vadd.f32 %v347, %v413
      %v418 = vld [vmem:[#allocation2] sm:$0xff]
      %v419 = vld [vmem:[#allocation2 + $0x8] sm:$0xf]
      %422 = vst [vmem:[#allocation1] ss:$2 sm:$0xff] %v418
      %s423 = scalar_lea.vmem [#allocation1], 16
      %424 = vst [vmem:[%s423] ss:$2 sm:$0xff] %v419
      %v425 = vld.sshfl [vmem:[#allocation1] sm:$0xff pattern:$0x75316420]
      %v426 = vld.sshfl [vmem:[#allocation1 + $0x8] sm:$0xff pattern:$0x75316420]
      %v427 = vld.sshfl [vmem:[#allocation1 + $0x10] sm:$0xff pattern:$0x75316420]
      %428 = vrot.lane.b32.xlu0 %v425, 112
      %v429 = vpop.permute.xlu0 %428
      %430 = vrot.lane.b32.xlu0 %v426, 112
      %v431 = vpop.permute.xlu0 %430
      %432 = vrot.lane.b32.xlu0 %v427, 112
      %v433 = vpop.permute.xlu0 %432
      %vm434 = vcmask 916480
      %v435 = vsel %vm434, %v429, %v431
      %v436 = vsel %vm434, %v431, %v433
      %v439 = vsel %vm235, %v435, 0.0
      %v440 = vsel %vm236, %v436, 0.0
      %s441 = scalar_lea.vmem %s1, 6
      %v442 = vld [vmem:[%s441] sm:$0x3]
      %v443 = vpack.c.bf16 %v439, %v439
      %v444 = vpack.c.bf16 %v440, %v440
      %v446 = vsel %vm278, %v442, 0
      %v449 = vsel %vm282, %v443, 0
      %v452 = vsel %vm282, %v444, 0
      %454 = vmatpush.bf16.msra.mxu0 0
      %455 = vmatpush.bf16.msra.mxu0 0
      %456 = vmatpush.bf16.msra.mxu0 0
      %457 = vmatpush.bf16.msra.mxu0 0
      %458 = vmatpush.bf16.msra.mxu0 0
      %459 = vmatpush.bf16.msra.mxu0 0
      %460 = vmatpush.bf16.msra.mxu0 0
      %461 = vmatpush.bf16.msra.mxu0 %v449
      %462 = vmatmul.bf16.gmra.mxu0 %v446
      %v463 = vpop.f32.mrf.mxu0
      %v464 = vadd.f32 0.0, %v463
      %v465 = vpop.f32.mrf.mxu0
      %466 = vdwg.mxu0
      %467 = vmatpush.bf16.msra.mxu0 0
      %468 = vmatpush.bf16.msra.mxu0 0
      %469 = vmatpush.bf16.msra.mxu0 0
      %470 = vmatpush.bf16.msra.mxu0 0
      %471 = vmatpush.bf16.msra.mxu0 0
      %472 = vmatpush.bf16.msra.mxu0 0
      %473 = vmatpush.bf16.msra.mxu0 0
      %474 = vmatpush.bf16.msra.mxu0 %v452
      %475 = vmatmul.bf16.gmra.mxu0 %v446
      %v476 = vpop.f32.mrf.mxu0
      %v477 = vadd.f32 0.0, %v476
      %v478 = vpop.f32.mrf.mxu0
      %479 = vdwg.mxu0
      %v480 = vadd.f32 %v416, %v464
      %v481 = vadd.f32 %v417, %v477
      %v482 = vld [vmem:[#allocation2] sm:$0xff]
      %v483 = vld [vmem:[#allocation2 + $0x8] sm:$0xf]
      %s484 = scalar_lea.vmem %s1, 8
      %v485 = vld [vmem:[%s484] sm:$0x3]
      %488 = vst [vmem:[#allocation1] ss:$2 sm:$0xff] %v482
      %s489 = scalar_lea.vmem [#allocation1], 16
      %490 = vst [vmem:[%s489] ss:$2 sm:$0xff] %v483
      %v491 = vld.sshfl [vmem:[#allocation1] sm:$0xff pattern:$0x75316420]
      %v492 = vld.sshfl [vmem:[#allocation1 + $0x8] sm:$0xff pattern:$0x75316420]
      %v493 = vld.sshfl [vmem:[#allocation1 + $0x10] sm:$0xff pattern:$0x75316420]
      %v497 = vpack.c.bf16 %v491, %v491
      %v498 = vpack.c.bf16 %v492, %v492
      %v499 = vpack.c.bf16 %v493, %v493
      %503 = vrot.lane.b32.xlu0 %v497, 111
      %v504 = vpop.permute.xlu0 %503
      %505 = vrot.lane.b32.xlu0 %v498, 111
      %v506 = vpop.permute.xlu0 %505
      %507 = vrot.lane.b32.xlu0 %v499, 111
      %v508 = vpop.permute.xlu0 %507
      %vm509 = vcmask 908288
      %v510 = vsel %vm509, %v504, %v506
      %v511 = vsel %vm509, %v506, %v508
      %v513 = vsel %vm278, %v485, 0
      %v516 = vsel %vm282, %v510, 0
      %v519 = vsel %vm282, %v511, 0
      %521 = vmatpush.bf16.msra.mxu0 0
      %522 = vmatpush.bf16.msra.mxu0 0
      %523 = vmatpush.bf16.msra.mxu0 0
      %524 = vmatpush.bf16.msra.mxu0 0
      %525 = vmatpush.bf16.msra.mxu0 0
      %526 = vmatpush.bf16.msra.mxu0 0
      %527 = vmatpush.bf16.msra.mxu0 0
      %528 = vmatpush.bf16.msra.mxu0 %v516
      %529 = vmatmul.bf16.gmra.mxu0 %v513
      %v530 = vpop.f32.mrf.mxu0
      %v531 = vadd.f32 0.0, %v530
      %v532 = vpop.f32.mrf.mxu0
      %533 = vdwg.mxu0
      %534 = vmatpush.bf16.msra.mxu0 0
      %535 = vmatpush.bf16.msra.mxu0 0
      %536 = vmatpush.bf16.msra.mxu0 0
      %537 = vmatpush.bf16.msra.mxu0 0
      %538 = vmatpush.bf16.msra.mxu0 0
      %539 = vmatpush.bf16.msra.mxu0 0
      %540 = vmatpush.bf16.msra.mxu0 0
      %541 = vmatpush.bf16.msra.mxu0 %v519
      %542 = vmatmul.bf16.gmra.mxu0 %v513
      %v543 = vpop.f32.mrf.mxu0
      %v544 = vadd.f32 0.0, %v543
      %v545 = vpop.f32.mrf.mxu0
      %546 = vdwg.mxu0
      %v547 = vadd.f32 %v480, %v531
      %v548 = vadd.f32 %v481, %v544
      %v549 = vld [vmem:[#allocation2] sm:$0xff]
      %v550 = vld [vmem:[#allocation2 + $0x8] sm:$0xf]
      %553 = vst [vmem:[#allocation1] ss:$2 sm:$0xff] %v549
      %s554 = scalar_lea.vmem [#allocation1], 16
      %555 = vst [vmem:[%s554] ss:$2 sm:$0xff] %v550
      %v556 = vld.sshfl [vmem:[#allocation1] sm:$0xff pattern:$0x75316420]
      %v557 = vld.sshfl [vmem:[#allocation1 + $0x8] sm:$0xff pattern:$0x75316420]
      %v558 = vld.sshfl [vmem:[#allocation1 + $0x10] sm:$0xff pattern:$0x75316420]
      %559 = vrot.lane.b32.xlu0 %v556, 110
      %v560 = vpop.permute.xlu0 %559
      %561 = vrot.lane.b32.xlu0 %v557, 110
      %v562 = vpop.permute.xlu0 %561
      %563 = vrot.lane.b32.xlu0 %v558, 110
      %v564 = vpop.permute.xlu0 %563
      %vm565 = vcmask 900096
      %v566 = vsel %vm565, %v560, %v562
      %v567 = vsel %vm565, %v562, %v564
      %v570 = vsel %vm354, %v566, 0.0
      %v571 = vsel %vm355, %v567, 0.0
      %s572 = scalar_lea.vmem %s1, 10
      %v573 = vld [vmem:[%s572] sm:$0x3]
      %v574 = vpack.c.bf16 %v570, %v570
      %v575 = vpack.c.bf16 %v571, %v571
      %v577 = vsel %vm278, %v573, 0
      %v580 = vsel %vm282, %v574, 0
      %v583 = vsel %vm282, %v575, 0
      %585 = vmatpush.bf16.msra.mxu0 0
      %586 = vmatpush.bf16.msra.mxu0 0
      %587 = vmatpush.bf16.msra.mxu0 0
      %588 = vmatpush.bf16.msra.mxu0 0
      %589 = vmatpush.bf16.msra.mxu0 0
      %590 = vmatpush.bf16.msra.mxu0 0
      %591 = vmatpush.bf16.msra.mxu0 0
      %592 = vmatpush.bf16.msra.mxu0 %v580
      %593 = vmatmul.bf16.gmra.mxu0 %v577
      %v594 = vpop.f32.mrf.mxu0
      %v595 = vadd.f32 0.0, %v594
      %v596 = vpop.f32.mrf.mxu0
      %597 = vdwg.mxu0
      %598 = vmatpush.bf16.msra.mxu0 0
      %599 = vmatpush.bf16.msra.mxu0 0
      %600 = vmatpush.bf16.msra.mxu0 0
      %601 = vmatpush.bf16.msra.mxu0 0
      %602 = vmatpush.bf16.msra.mxu0 0
      %603 = vmatpush.bf16.msra.mxu0 0
      %604 = vmatpush.bf16.msra.mxu0 0
      %605 = vmatpush.bf16.msra.mxu0 %v583
      %606 = vmatmul.bf16.gmra.mxu0 %v577
      %v607 = vpop.f32.mrf.mxu0
      %v608 = vadd.f32 0.0, %v607
      %v609 = vpop.f32.mrf.mxu0
      %610 = vdwg.mxu0
      %v611 = vadd.f32 %v547, %v595
      %v612 = vadd.f32 %v548, %v608
      %v613 = vld [vmem:[#allocation2] sm:$0xff]
      %v614 = vld [vmem:[#allocation2 + $0x8] sm:$0xf]
      %617 = vst [vmem:[#allocation1] ss:$2 sm:$0xff] %v613
      %s618 = scalar_lea.vmem [#allocation1], 16
      %619 = vst [vmem:[%s618] ss:$2 sm:$0xff] %v614
      %v620 = vld.sshfl [vmem:[#allocation1] sm:$0xff pattern:$0x75316420]
      %v621 = vld.sshfl [vmem:[#allocation1 + $0x8] sm:$0xff pattern:$0x75316420]
      %v622 = vld.sshfl [vmem:[#allocation1 + $0x10] sm:$0xff pattern:$0x75316420]
      %623 = vrot.lane.b32.xlu0 %v620, 96
      %v624 = vpop.permute.xlu0 %623
      %625 = vrot.lane.b32.xlu0 %v621, 96
      %v626 = vpop.permute.xlu0 %625
      %627 = vrot.lane.b32.xlu0 %v622, 96
      %v628 = vpop.permute.xlu0 %627
      %vm629 = vcmask 785408
      %v630 = vsel %vm629, %v624, %v626
      %v631 = vsel %vm629, %v626, %v628
      %v634 = vsel %vm235, %v630, 0.0
      %v635 = vsel %vm236, %v631, 0.0
      %s636 = scalar_lea.vmem %s1, 12
      %v637 = vld [vmem:[%s636] sm:$0x3]
      %v638 = vpack.c.bf16 %v634, %v634
      %v639 = vpack.c.bf16 %v635, %v635
      %v641 = vsel %vm278, %v637, 0
      %v644 = vsel %vm282, %v638, 0
      %v647 = vsel %vm282, %v639, 0
      %649 = vmatpush.bf16.msra.mxu0 0
      %650 = vmatpush.bf16.msra.mxu0 0
      %651 = vmatpush.bf16.msra.mxu0 0
      %652 = vmatpush.bf16.msra.mxu0 0
      %653 = vmatpush.bf16.msra.mxu0 0
      %654 = vmatpush.bf16.msra.mxu0 0
      %655 = vmatpush.bf16.msra.mxu0 0
      %656 = vmatpush.bf16.msra.mxu0 %v644
      %657 = vmatmul.bf16.gmra.mxu0 %v641
      %v658 = vpop.f32.mrf.mxu0
      %v659 = vadd.f32 0.0, %v658
      %v660 = vpop.f32.mrf.mxu0
      %661 = vdwg.mxu0
      %662 = vmatpush.bf16.msra.mxu0 0
      %663 = vmatpush.bf16.msra.mxu0 0
      %664 = vmatpush.bf16.msra.mxu0 0
      %665 = vmatpush.bf16.msra.mxu0 0
      %666 = vmatpush.bf16.msra.mxu0 0
      %667 = vmatpush.bf16.msra.mxu0 0
      %668 = vmatpush.bf16.msra.mxu0 0
      %669 = vmatpush.bf16.msra.mxu0 %v647
      %670 = vmatmul.bf16.gmra.mxu0 %v641
      %v671 = vpop.f32.mrf.mxu0
      %v672 = vadd.f32 0.0, %v671
      %v673 = vpop.f32.mrf.mxu0
      %674 = vdwg.mxu0
      %v675 = vadd.f32 %v611, %v659
      %v676 = vadd.f32 %v612, %v672
      %v677 = vld [vmem:[#allocation2] sm:$0xff]
      %v678 = vld [vmem:[#allocation2 + $0x8] sm:$0xf]
      %s679 = scalar_lea.vmem %s1, 14
      %v680 = vld [vmem:[%s679] sm:$0x3]
      %683 = vst [vmem:[#allocation1] ss:$2 sm:$0xff] %v677
      %s684 = scalar_lea.vmem [#allocation1], 16
      %685 = vst [vmem:[%s684] ss:$2 sm:$0xff] %v678
      %v686 = vld.sshfl [vmem:[#allocation1] sm:$0xff pattern:$0x75316420]
      %v687 = vld.sshfl [vmem:[#allocation1 + $0x8] sm:$0xff pattern:$0x75316420]
      %v688 = vld.sshfl [vmem:[#allocation1 + $0x10] sm:$0xff pattern:$0x75316420]
      %v692 = vpack.c.bf16 %v686, %v686
      %v693 = vpack.c.bf16 %v687, %v687
      %v694 = vpack.c.bf16 %v688, %v688
      %698 = vrot.lane.b32.xlu0 %v692, 95
      %v699 = vpop.permute.xlu0 %698
      %700 = vrot.lane.b32.xlu0 %v693, 95
      %v701 = vpop.permute.xlu0 %700
      %702 = vrot.lane.b32.xlu0 %v694, 95
      %v703 = vpop.permute.xlu0 %702
      %vm704 = vcmask 777216
      %v705 = vsel %vm704, %v699, %v701
      %v706 = vsel %vm704, %v701, %v703
      %v708 = vsel %vm278, %v680, 0
      %v711 = vsel %vm282, %v705, 0
      %v714 = vsel %vm282, %v706, 0
      %716 = vmatpush.bf16.msra.mxu0 0
      %717 = vmatpush.bf16.msra.mxu0 0
      %718 = vmatpush.bf16.msra.mxu0 0
      %719 = vmatpush.bf16.msra.mxu0 0
      %720 = vmatpush.bf16.msra.mxu0 0
      %721 = vmatpush.bf16.msra.mxu0 0
      %722 = vmatpush.bf16.msra.mxu0 0
      %723 = vmatpush.bf16.msra.mxu0 %v711
      %724 = vmatmul.bf16.gmra.mxu0 %v708
      %v725 = vpop.f32.mrf.mxu0
      %v726 = vadd.f32 0.0, %v725
      %v727 = vpop.f32.mrf.mxu0
      %728 = vdwg.mxu0
      %729 = vmatpush.bf16.msra.mxu0 0
      %730 = vmatpush.bf16.msra.mxu0 0
      %731 = vmatpush.bf16.msra.mxu0 0
      %732 = vmatpush.bf16.msra.mxu0 0
      %733 = vmatpush.bf16.msra.mxu0 0
      %734 = vmatpush.bf16.msra.mxu0 0
      %735 = vmatpush.bf16.msra.mxu0 0
      %736 = vmatpush.bf16.msra.mxu0 %v714
      %737 = vmatmul.bf16.gmra.mxu0 %v708
      %v738 = vpop.f32.mrf.mxu0
      %v739 = vadd.f32 0.0, %v738
      %v740 = vpop.f32.mrf.mxu0
      %741 = vdwg.mxu0
      %v742 = vadd.f32 %v675, %v726
      %v743 = vadd.f32 %v676, %v739
      %v744 = vld [vmem:[#allocation2] sm:$0xff]
      %v745 = vld [vmem:[#allocation2 + $0x8] sm:$0xf]
      %748 = vst [vmem:[#allocation1] ss:$2 sm:$0xff] %v744
      %s749 = scalar_lea.vmem [#allocation1], 16
      %750 = vst [vmem:[%s749] ss:$2 sm:$0xff] %v745
      %v751 = vld.sshfl [vmem:[#allocation1] sm:$0xff pattern:$0x75316420]
      %v752 = vld.sshfl [vmem:[#allocation1 + $0x8] sm:$0xff pattern:$0x75316420]
      %v753 = vld.sshfl [vmem:[#allocation1 + $0x10] sm:$0xff pattern:$0x75316420]
      %754 = vrot.lane.b32.xlu0 %v751, 94
      %v755 = vpop.permute.xlu0 %754
      %756 = vrot.lane.b32.xlu0 %v752, 94
      %v757 = vpop.permute.xlu0 %756
      %758 = vrot.lane.b32.xlu0 %v753, 94
      %v759 = vpop.permute.xlu0 %758
      %vm760 = vcmask 769024
      %v761 = vsel %vm760, %v755, %v757
      %v762 = vsel %vm760, %v757, %v759
      %v765 = vsel %vm354, %v761, 0.0
      %v766 = vsel %vm355, %v762, 0.0
      %s767 = scalar_lea.vmem %s1, 16
      %v768 = vld [vmem:[%s767] sm:$0x3]
      %v769 = vpack.c.bf16 %v765, %v765
      %v770 = vpack.c.bf16 %v766, %v766
      %v772 = vsel %vm278, %v768, 0
      %v775 = vsel %vm282, %v769, 0
      %v778 = vsel %vm282, %v770, 0
      %780 = vmatpush.bf16.msra.mxu0 0
      %781 = vmatpush.bf16.msra.mxu0 0
      %782 = vmatpush.bf16.msra.mxu0 0
      %783 = vmatpush.bf16.msra.mxu0 0
      %784 = vmatpush.bf16.msra.mxu0 0
      %785 = vmatpush.bf16.msra.mxu0 0
      %786 = vmatpush.bf16.msra.mxu0 0
      %787 = vmatpush.bf16.msra.mxu0 %v775
      %788 = vmatmul.bf16.gmra.mxu0 %v772
      %v789 = vpop.f32.mrf.mxu0
      %v790 = vadd.f32 0.0, %v789
      %v791 = vpop.f32.mrf.mxu0
      %792 = vdwg.mxu0
      %793 = vmatpush.bf16.msra.mxu0 0
      %794 = vmatpush.bf16.msra.mxu0 0
      %795 = vmatpush.bf16.msra.mxu0 0
      %796 = vmatpush.bf16.msra.mxu0 0
      %797 = vmatpush.bf16.msra.mxu0 0
      %798 = vmatpush.bf16.msra.mxu0 0
      %799 = vmatpush.bf16.msra.mxu0 0
      %800 = vmatpush.bf16.msra.mxu0 %v778
      %801 = vmatmul.bf16.gmra.mxu0 %v772
      %v802 = vpop.f32.mrf.mxu0
      %v803 = vadd.f32 0.0, %v802
      %v804 = vpop.f32.mrf.mxu0
      %805 = vdwg.mxu0
      %v806 = vadd.f32 %v742, %v790
      %v807 = vadd.f32 %v743, %v803
      %v810 = vrot.slane %v807, 4
      %vm811 = vcmask 1043456
      %v812 = vsel %vm811, %v806, %v810
      %814 = vst [vmem:[%s177] sm:$0xff] %v812
      %v815 = vsel %vm811, %v806, 0.0
      %v816 = vsel %vm811, %v807, 0.0
      %v817 = vadd.f32 %v815, %v816
      %818 = vadd.xlane.f32.xlu0 %v817
      %v819 = vpop.xlane.xlu0 %818
      %v820 = vmul.f32 %v806, %v806
      %v821 = vmul.f32 %v807, %v807
      %v822 = vsel %vm811, %v820, 0.0
      %v823 = vsel %vm811, %v821, 0.0
      %v824 = vadd.f32 %v822, %v823
      %825 = vadd.xlane.f32.xlu0 %v824
      %v826 = vpop.xlane.xlu0 %825
      %vm827 = vcmask 7168
      %v828 = vsel %vm827, %v819, %v826
      %vm829 = vcmask 11264
      %830 = vst.msk [vmem:[%s181] sm:$0xf] %vm829, %v828
      %p831 = scmp.lt.s32.totalorder %s15, 1
      %s832 = scalar_select %p831, %s15, 1
      %s833 = smul.addr %s832, 2
      %s834 = smul.addr %s833, 4
      %s835 = scalar_lea.vmem %s2, %s834
      %p836 = scmp.lt.s32.totalorder %s15, 1
      %s837 = scalar_select %p836, %s15, 1
      %s838 = smul.addr %s837, 4
      %s839 = scalar_lea.vmem %s3, %s838
      // Predicated region
      $region29: #{basic_block_forward.3} parent=27 // pred_check
        %p840 = pneg %p80
      $region30: #{basic_block_forward.3} parent=27 // pred_check_branch
        %842 = sbr.rel (%p840) target = $region32
      $region31: #{basic_block_forward.3} parent=27 // pred_region
        _
      $region32: #{basic_block_forward.3} parent=27 // pred_fallthru
        _
      // Predicated region
      $region33: #{basic_block_forward.3} parent=27 // pred_check
        %p843 = pneg %p106
      $region34: #{basic_block_forward.3} parent=27 // pred_check_branch
        %845 = sbr.rel (%p843) target = $region36
      $region35: #{basic_block_forward.3} parent=27 // pred_region
        _
      $region36: #{basic_block_forward.3} parent=27 // pred_fallthru
        _
    $region28: #{basic_block_forward.3} parent=5 // pred_fallthru
      _
    %p846 = scmp.le.s32.totalorder 2, %s10
    // Predicated region
    $region37: #{basic_block_forward.3} parent=5 // pred_check
      %p847 = pneg %p846
    $region38: #{basic_block_forward.3} parent=5 // pred_check_branch
      %849 = sbr.rel (%p847) target = $region40
    $region39: #{basic_block_forward.3} parent=5 // pred_region
      %s850 = ssub.s32 %s10, 2
      // Predicated region
      $region41: #{basic_block_forward.3} parent=39 // pred_check
        %p851 = pneg %p86
      $region42: #{basic_block_forward.3} parent=39 // pred_check_branch
        %853 = sbr.rel (%p851) target = $region44
      $region43: #{basic_block_forward.3} parent=39 // pred_region
        %p854 = scmp.lt.s32.totalorder %s16, 1
        %s855 = scalar_select %p854, %s16, 1
        %s856 = smul.addr %s855, 2
        %s857 = smul.addr %s856, 4
        %s858 = scalar_lea.vmem %s2, %s857
      $region44: #{basic_block_forward.3} parent=39 // pred_fallthru
        _
      // Predicated region
      $region45: #{basic_block_forward.3} parent=39 // pred_check
        %p859 = pneg %p112
      $region46: #{basic_block_forward.3} parent=39 // pred_check_branch
        %861 = sbr.rel (%p859) target = $region48
      $region47: #{basic_block_forward.3} parent=39 // pred_region
        %p862 = scmp.lt.s32.totalorder %s16, 1
        %s863 = scalar_select %p862, %s16, 1
        %s864 = smul.addr %s863, 4
        %s865 = scalar_lea.vmem %s3, %s864
      $region48: #{basic_block_forward.3} parent=39 // pred_fallthru
        _
    $region40: #{basic_block_forward.3} parent=5 // pred_fallthru
      _
  $region6: #{basic_block_forward.3} parent=0 // loop_footer
    %s14 = sadd.s32 1, %s10
  $region7: #{basic_block_forward.3} parent=0 // loop_footer_branch
    %9 = sbr.rel target = $region3
  $region8: #{basic_block_forward.3} parent=0 // loop_exit
    _

// kernel: basic_block_forward.4
$region0: #{basic_block_forward.4}
  #allocation0 [shape = 'u32[]', space=smem, size = 0x4, offset = 0x4, fixed_abs, tag = 'smem constant byte address 0x4 - core index']
  #allocation1 [shape = 'u32[72,128]{1,0:T(1,128)}', space=vmem, size = 0x9000, scoped, tag = 'internal scratch']
  #allocation2 [shape = 'f32[4,290]{1,0:T(4,128)}', space=vmem, size = 0x1800, scoped, tag = 'scratch operand']
  %s0 = inlined_call_operand.vmem [shape: f32[2,4,256], index: 0, kind: input, shape index: {}]
  %s1 = inlined_call_operand.vmem [shape: f32[4,1], index: 1, kind: input, shape index: {}]
  %s2 = inlined_call_operand.vmem [shape: f32[4,1], index: 2, kind: input, shape index: {}]
  %s3 = inlined_call_operand.vmem [shape: bf16[9,4,4], index: 3, kind: input, shape index: {}]
  %s4 = inlined_call_operand.vmem [shape: f32[2,4,256], index: 4, kind: output, shape index: {0}]
  %s5 = inlined_call_operand.vmem [shape: f32[2,4,2], index: 5, kind: output, shape index: {1}]
  %6 = xla_tuple %s4, %s5
  %s7 = sld [smem:[#allocation0]]
  $region57: #{basic_block_forward.4} parent=0
    _
  %s9 = ssub.s32 1, %s7
  %s10 = scalar_select 0, %s9, %s7
  loop: start=0, step=1, limit=4
  $region2: #{basic_block_forward.4} parent=0 // loop_pre_header
    _
  $region3: #{basic_block_forward.4} parent=0 // loop_header
    %s12 = sphi 0, %s16
    %p13 = scmp.ge.s32.totalorder %s12, 4
    %s22 = sphi 0, %s24
    %s25 = sphi 0, %s22
    %s26 = sphi 0, %s25
    %s42 = sphi 0, %s26
    %s46 = sphi 0, %s46
    %s48 = sphi 0, %s46
    %s49 = sphi 0, %s48
    %s63 = sphi 0, %s49
    %s67 = sphi 0, %s67
    %s69 = sphi 0, %s67
    %s70 = sphi 0, %s69
    %s84 = sphi 0, %s70
    %s88 = sphi 0, %s88
    %s90 = sphi 0, %s88
    %s91 = sphi 0, %s90
    %s105 = sphi 0, %s91
    %s111 = sphi 0, %s113
    %s114 = sphi 0, %s111
    %s115 = sphi 0, %s114
    %s131 = sphi 0, %s115
    %s137 = sphi 0, %s139
    %s140 = sphi 0, %s137
    %s141 = sphi 0, %s140
    %s157 = sphi 0, %s141
  $region4: #{basic_block_forward.4} parent=0 // loop_header_branch
    %15 = sbr.rel (%p13) target = $region8
  $region5: #{basic_block_forward.4} parent=0 // loop_body
    %s17 = ssub.s32 %s12, 1
    %s18 = ssub.s32 %s12, 2
    %s19 = sadd.s32 %s12, 1
    %s20 = ssub.s32 %s12, %s19
    %p21 = scmp.eq.s32.totalorder %s20, 0
    %s23 = sadd.s32 %s22, 1
    %s24 = scalar_select %p21, %s22, %s23
    %p27 = pneg %p21
    %p28 = scmp.eq.s32.totalorder %s12, 1
    %p29 = por %p27, %p28
    %p30 = scmp.ne.s32.totalorder %s22, %s25
    %p31 = scmp.eq.s32.totalorder %s12, 0
    %p32 = por %p30, %p31
    %p33 = scmp.ne.s32.totalorder %s22, %s25
    %p34 = scmp.eq.s32.totalorder %s17, 1
    %p35 = por %p33, %p34
    %p36 = scmp.ne.s32.totalorder %s25, %s26
    %p37 = scmp.eq.s32.totalorder %s17, 0
    %p38 = por %p36, %p37
    %p39 = scmp.ne.s32.totalorder %s25, %s26
    %p40 = scmp.eq.s32.totalorder %s18, 1
    %p41 = por %p39, %p40
    %p43 = scmp.ne.s32.totalorder %s26, %s42
    %p44 = scmp.eq.s32.totalorder %s18, 0
    %p45 = por %p43, %p44
    %s47 = sadd.s32 %s46, 1
    %p50 = scmp.eq.s32.totalorder %s12, 1
    %p51 = scmp.ne.s32.totalorder %s46, %s48
    %p52 = scmp.eq.s32.totalorder %s12, 0
    %p53 = por %p51, %p52
    %p54 = scmp.ne.s32.totalorder %s46, %s48
    %p55 = scmp.eq.s32.totalorder %s17, 1
    %p56 = por %p54, %p55
    %p57 = scmp.ne.s32.totalorder %s48, %s49
    %p58 = scmp.eq.s32.totalorder %s17, 0
    %p59 = por %p57, %p58
    %p60 = scmp.ne.s32.totalorder %s48, %s49
    %p61 = scmp.eq.s32.totalorder %s18, 1
    %p62 = por %p60, %p61
    %p64 = scmp.ne.s32.totalorder %s49, %s63
    %p65 = scmp.eq.s32.totalorder %s18, 0
    %p66 = por %p64, %p65
    %s68 = sadd.s32 %s67, 1
    %p71 = scmp.eq.s32.totalorder %s12, 1
    %p72 = scmp.ne.s32.totalorder %s67, %s69
    %p73 = scmp.eq.s32.totalorder %s12, 0
    %p74 = por %p72, %p73
    %p75 = scmp.ne.s32.totalorder %s67, %s69
    %p76 = scmp.eq.s32.totalorder %s17, 1
    %p77 = por %p75, %p76
    %p78 = scmp.ne.s32.totalorder %s69, %s70
    %p79 = scmp.eq.s32.totalorder %s17, 0
    %p80 = por %p78, %p79
    %p81 = scmp.ne.s32.totalorder %s69, %s70
    %p82 = scmp.eq.s32.totalorder %s18, 1
    %p83 = por %p81, %p82
    %p85 = scmp.ne.s32.totalorder %s70, %s84
    %p86 = scmp.eq.s32.totalorder %s18, 0
    %p87 = por %p85, %p86
    %s89 = sadd.s32 %s88, 1
    %p92 = scmp.eq.s32.totalorder %s12, 1
    %p93 = scmp.ne.s32.totalorder %s88, %s90
    %p94 = scmp.eq.s32.totalorder %s12, 0
    %p95 = por %p93, %p94
    %p96 = scmp.ne.s32.totalorder %s88, %s90
    %p97 = scmp.eq.s32.totalorder %s17, 1
    %p98 = por %p96, %p97
    %p99 = scmp.ne.s32.totalorder %s90, %s91
    %p100 = scmp.eq.s32.totalorder %s17, 0
    %p101 = por %p99, %p100
    %p102 = scmp.ne.s32.totalorder %s90, %s91
    %p103 = scmp.eq.s32.totalorder %s18, 1
    %p104 = por %p102, %p103
    %p106 = scmp.ne.s32.totalorder %s91, %s105
    %p107 = scmp.eq.s32.totalorder %s18, 0
    %p108 = por %p106, %p107
    %s109 = ssub.s32 %s12, %s19
    %p110 = scmp.eq.s32.totalorder %s109, 0
    %s112 = sadd.s32 %s111, 1
    %s113 = scalar_select %p110, %s111, %s112
    %p116 = pneg %p110
    %p117 = scmp.eq.s32.totalorder %s12, 1
    %p118 = por %p116, %p117
    %p119 = scmp.ne.s32.totalorder %s111, %s114
    %p120 = scmp.eq.s32.totalorder %s12, 0
    %p121 = por %p119, %p120
    %p122 = scmp.ne.s32.totalorder %s111, %s114
    %p123 = scmp.eq.s32.totalorder %s17, 1
    %p124 = por %p122, %p123
    %p125 = scmp.ne.s32.totalorder %s114, %s115
    %p126 = scmp.eq.s32.totalorder %s17, 0
    %p127 = por %p125, %p126
    %p128 = scmp.ne.s32.totalorder %s114, %s115
    %p129 = scmp.eq.s32.totalorder %s18, 1
    %p130 = por %p128, %p129
    %p132 = scmp.ne.s32.totalorder %s115, %s131
    %p133 = scmp.eq.s32.totalorder %s18, 0
    %p134 = por %p132, %p133
    %s135 = ssub.s32 %s12, %s19
    %p136 = scmp.eq.s32.totalorder %s135, 0
    %s138 = sadd.s32 %s137, 1
    %s139 = scalar_select %p136, %s137, %s138
    %p142 = pneg %p136
    %p143 = scmp.eq.s32.totalorder %s12, 1
    %p144 = por %p142, %p143
    %p145 = scmp.ne.s32.totalorder %s137, %s140
    %p146 = scmp.eq.s32.totalorder %s12, 0
    %p147 = por %p145, %p146
    %p148 = scmp.ne.s32.totalorder %s137, %s140
    %p149 = scmp.eq.s32.totalorder %s17, 1
    %p150 = por %p148, %p149
    %p151 = scmp.ne.s32.totalorder %s140, %s141
    %p152 = scmp.eq.s32.totalorder %s17, 0
    %p153 = por %p151, %p152
    %p154 = scmp.ne.s32.totalorder %s140, %s141
    %p155 = scmp.eq.s32.totalorder %s18, 1
    %p156 = por %p154, %p155
    %p158 = scmp.ne.s32.totalorder %s141, %s157
    %p159 = scmp.eq.s32.totalorder %s18, 0
    %p160 = por %p158, %p159
    %p161 = scmp.le.s32.totalorder 1, %s12
    %p162 = scmp.lt.s32.totalorder %s12, 3
    %p163 = pnand %p161, %p162
    %p164 = pneg %p163
    // Predicated region
    $region9: #{basic_block_forward.4} parent=5 // pred_check
      _
    $region10: #{basic_block_forward.4} parent=5 // pred_check_branch
      %166 = sbr.rel (%p163) target = $region12
    $region11: #{basic_block_forward.4} parent=5 // pred_region
      %s167 = ssub.s32 %s12, 1
      // Predicated region
      $region13: #{basic_block_forward.4} parent=11 // pred_check
        %p168 = pneg %p59
      $region14: #{basic_block_forward.4} parent=11 // pred_check_branch
        %170 = sbr.rel (%p168) target = $region16
      $region15: #{basic_block_forward.4} parent=11 // pred_region
        _
      $region16: #{basic_block_forward.4} parent=11 // pred_fallthru
        _
      // Predicated region
      $region17: #{basic_block_forward.4} parent=11 // pred_check
        %p171 = pneg %p80
      $region18: #{basic_block_forward.4} parent=11 // pred_check_branch
        %173 = sbr.rel (%p171) target = $region20
      $region19: #{basic_block_forward.4} parent=11 // pred_region
        _
      $region20: #{basic_block_forward.4} parent=11 // pred_fallthru
        _
      // Predicated region
      $region21: #{basic_block_forward.4} parent=11 // pred_check
        %p174 = pneg %p101
      $region22: #{basic_block_forward.4} parent=11 // pred_check_branch
        %176 = sbr.rel (%p174) target = $region24
      $region23: #{basic_block_forward.4} parent=11 // pred_region
        _
      $region24: #{basic_block_forward.4} parent=11 // pred_fallthru
        _
    $region12: #{basic_block_forward.4} parent=5 // pred_fallthru
      _
    %p177 = scmp.lt.s32.totalorder %s12, 2
    // Predicated region
    $region25: #{basic_block_forward.4} parent=5 // pred_check
      %p178 = pneg %p177
    $region26: #{basic_block_forward.4} parent=5 // pred_check_branch
      %180 = sbr.rel (%p178) target = $region28
    $region27: #{basic_block_forward.4} parent=5 // pred_region
      // Predicated region
      $region29: #{basic_block_forward.4} parent=27 // pred_check
        %p181 = pneg %p32
      $region30: #{basic_block_forward.4} parent=27 // pred_check_branch
        %183 = sbr.rel (%p181) target = $region32
      $region31: #{basic_block_forward.4} parent=27 // pred_region
        %p184 = scmp.lt.s32.totalorder %s12, 1
        %s185 = scalar_select %p184, %s12, 1
        %s186 = smul.addr %s185, 2
        %s187 = smul.addr %s186, 4
        %s188 = scalar_lea.vmem %s0, %s187
      $region32: #{basic_block_forward.4} parent=27 // pred_fallthru
        _
    $region28: #{basic_block_forward.4} parent=5 // pred_fallthru
      _
    %p189 = scmp.le.s32.totalorder 1, %s12
    %p190 = scmp.lt.s32.totalorder %s12, 3
    %p191 = pnand %p189, %p190
    %p192 = pneg %p191
    // Predicated region
    $region33: #{basic_block_forward.4} parent=5 // pred_check
      _
    $region34: #{basic_block_forward.4} parent=5 // pred_check_branch
      %194 = sbr.rel (%p191) target = $region36
    $region35: #{basic_block_forward.4} parent=5 // pred_region
      %s195 = ssub.s32 %s12, 1
      %p196 = scmp.lt.s32.totalorder %s17, 1
      %s197 = scalar_select %p196, %s17, 1
      %s198 = smul.addr %s197, 2
      %s199 = smul.addr %s198, 4
      %s200 = scalar_lea.vmem %s0, %s199
      %p201 = pneg %p38
      %p202 = pneg %p35
      %p203 = pneg %p59
      %p204 = pneg %p56
      %p205 = pneg %p80
      %p206 = pneg %p77
      %p207 = pneg %p101
      %p208 = pneg %p98
      %p209 = pneg %p127
      %p210 = pneg %p124
      %p211 = scmp.lt.s32.totalorder %s17, 1
      %s212 = scalar_select %p211, %s17, 1
      %s213 = smul.addr %s212, 2
      %s214 = smul.addr %s213, 4
      %s215 = scalar_lea.vmem %s4, %s214
      %p216 = pneg %p153
      %p217 = pneg %p150
      %p218 = scmp.lt.s32.totalorder %s17, 1
      %s219 = scalar_select %p218, %s17, 1
      %s220 = smul.addr %s219, 4
      %s221 = scalar_lea.vmem %s5, %s220
      %p222 = scmp.lt.s32.totalorder %s17, 1
      %s223 = scalar_select %p222, %s17, 1
      %s224 = smul.addr %s223, 2
      %s225 = smul.addr %s224, 4
      %s226 = scalar_lea.vmem %s0, %s225
      %p227 = scmp.lt.s32.totalorder %s17, 1
      %s228 = scalar_select %p227, %s17, 1
      %s229 = smul.addr %s228, 2
      %s230 = smul.addr %s229, 4
      %s231 = scalar_lea.vmem %s4, %s230
      %p232 = scmp.lt.s32.totalorder %s17, 1
      %s233 = scalar_select %p232, %s17, 1
      %s234 = smul.addr %s233, 4
      %s235 = scalar_lea.vmem %s5, %s234
      %v237 = vld [vmem:[%s226] sm:$0xff]
      %v238 = vld [vmem:[%s1] sm:$0xf]
      %240 = vset.pattern.permute.xlu0 0
      %241 = vperm.xlu0 %240, %v238
      %v242 = vpop.permute.xlu0 %241
      %v244 = vunpack.c.l.s4 839922192
      %v245 = vunpack.c.0.s8 %v244
      %v246 = vperm.slane %v242, %v245
      %v248 = vmul.f32 %v237, %v246
      %v249 = vld [vmem:[%s2] sm:$0xf]
      %251 = vset.pattern.permute.xlu0 0
      %252 = vperm.xlu0 %251, %v249
      %v253 = vpop.permute.xlu0 %252
      %v255 = vunpack.c.l.s4 839922192
      %v256 = vunpack.c.0.s8 %v255
      %v257 = vperm.slane %v253, %v256
      %v259 = vadd.f32 %v248, %v257
      %v260 = vmax.f32 %v259, 0.0
      %vm261 = vcmask 134144
      %262 = vst.msk [vmem:[#allocation2] sm:$0xf] %vm261, 0.0
      %264 = vrot.lane.b32.xlu0 %v260, 17
      %v265 = vpop.permute.xlu0 %264
      %v266 = vrot.slane %v265, 4
      %vm267 = vcmask 138240
      %v268 = vsel %vm267, %v266, %v265
      %vm271 = vcmask 1043592
      %vm272 = vcmask 1047556
      %vm273 = vmor %vm272, %vm271
      %274 = vst.msk [vmem:[#allocation2] sm:$0xff] %vm273, %v268
      %275 = vst.msk [vmem:[#allocation2 + $0x8] sm:$0xf] %vm261, %v266
      %vm276 = vcmask 273544
      %277 = vst.msk [vmem:[#allocation2 + $0x8] sm:$0xf] %vm276, 0.0
      %v278 = vlaneseq
      %v279 = vand.u32 %v278, 127
      %v280 = vadd.s32 %v279, 128
      %vm281 = vcmp.lt.s32.totalorder %v279, 0
      %v282 = vsub.s32 0, %v279
      %v283 = vsel %vm281, %v282, %v279
      %v284 = vshrl.u32 %v283, 4
      %v285 = vand.u32 %v283, 15
      %v286 = vsub.s32 0, %v285
      %v287 = vsel %vm281, %v286, %v285
      %vm288 = vcmp.lt.s32.totalorder %v280, 0
      %v289 = vsub.s32 0, %v280
      %v290 = vsel %vm288, %v289, %v280
      %v291 = vshrl.u32 %v290, 4
      %v292 = vand.u32 %v290, 15
      %v293 = vsub.s32 0, %v292
      %v294 = vsel %vm288, %v293, %v292
      %vm295 = vcmp.ne.s32.totalorder %v287, 0
      %vm296 = vcmp.ne.s32.totalorder %v294, 0
      %vm297 = vcmp.lt.s32.totalorder %v287, 0
      %vm298 = vcmp.lt.s32.totalorder %v294, 0
      %vm299 = vmand %vm297, %vm295
      %vm300 = vmand %vm298, %vm296
      %v301 = vadd.s32 %v287, 16
      %v302 = vadd.s32 %v294, 16
      %v303 = vsel %vm299, %v301, %v287
      %v304 = vsel %vm300, %v302, %v294
      %vm305 = vcmp.ge.s32.totalorder %v303, 1
      %vm306 = vcmp.ge.s32.totalorder %v304, 1
      %vm307 = vcmp.le.s32.totalorder %v303, 14
      %vm308 = vcmp.le.s32.totalorder %v304, 14
      %v309 = vld [vmem:[#allocation2] sm:$0xff]
      %v310 = vsel %vm305, 1, 0
      %v311 = vsel %vm306, 1, 0
      %vm312 = vcmp.eq.s32.totalorder %v310, 1
      %vm313 = vcmp.eq.s32.totalorder %v311, 1
      %315 = vst [vmem:[#allocation1] ss:$2 sm:$0xff] %v309
      %v316 = vld.sshfl [vmem:[#allocation1] sm:$0xff pattern:$0x75316420]
      %v317 = vld.sshfl [vmem:[#allocation1 + $0x8] sm:$0xff pattern:$0x75316420]
      %v320 = vsel %vm312, %v316, 0.0
      %v321 = vsel %vm313, %v317, 0.0
      %v322 = vld [vmem:[%s3] sm:$0x3]
      %v323 = vpack.c.bf16 %v320, %v320
      %v324 = vpack.c.bf16 %v321, %v321
      %v325 = vld [vmem:[#allocation2] sm:$0xff]
      %v326 = vld [vmem:[#allocation2 + $0x8] sm:$0xf]
      %s327 = scalar_lea.vmem %s3, 2
      %v328 = vld [vmem:[%s327] sm:$0x3]
      %331 = vst [vmem:[#allocation1] ss:$2 sm:$0xff] %v325
      %s332 = scalar_lea.vmem [#allocation1], 16
      %333 = vst [vmem:[%s332] ss:$2 sm:$0xff] %v326
      %v334 = vld.sshfl [vmem:[#allocation1] sm:$0xff pattern:$0x75316420]
      %v335 = vld.sshfl [vmem:[#allocation1 + $0x8] sm:$0xff pattern:$0x75316420]
      %v336 = vld.sshfl [vmem:[#allocation1 + $0x10] sm:$0xff pattern:$0x75316420]
      %v340 = vpack.c.bf16 %v334, %v334
      %v341 = vpack.c.bf16 %v335, %v335
      %v342 = vpack.c.bf16 %v336, %v336
      %346 = vrot.lane.b32.xlu0 %v340, 127
      %v347 = vpop.permute.xlu0 %346
      %348 = vrot.lane.b32.xlu0 %v341, 127
      %v349 = vpop.permute.xlu0 %348
      %350 = vrot.lane.b32.xlu0 %v342, 127
      %v351 = vpop.permute.xlu0 %350
      %vm352 = vcmask 1039360
      %v353 = vsel %vm352, %v347, %v349
      %v354 = vsel %vm352, %v349, %v351
      %vm355 = vcmask 31744
      %v357 = vsel %vm355, %v328, 0
      %vm359 = vcmask 1041408
      %v361 = vsel %vm359, %v353, 0
      %v364 = vsel %vm359, %v354, 0
      %366 = vmatpush.bf16.msra.mxu0 0
      %367 = vmatpush.bf16.msra.mxu0 0
      %368 = vmatpush.bf16.msra.mxu0 0
      %369 = vmatpush.bf16.msra.mxu0 0
      %370 = vmatpush.bf16.msra.mxu0 0
      %371 = vmatpush.bf16.msra.mxu0 0
      %372 = vmatpush.bf16.msra.mxu0 0
      %373 = vmatpush.bf16.msra.mxu0 %v361
      %374 = vmatmul.bf16.gmra.mxu0 %v357
      %v375 = vpop.f32.mrf.mxu0
      %v376 = vadd.f32 0.0, %v375
      %v377 = vpop.f32.mrf.mxu0
      %378 = vdwg.mxu0
      %379 = vmatpush.bf16.msra.mxu0 0
      %380 = vmatpush.bf16.msra.mxu0 0
      %381 = vmatpush.bf16.msra.mxu0 0
      %382 = vmatpush.bf16.msra.mxu0 0
      %383 = vmatpush.bf16.msra.mxu0 0
      %384 = vmatpush.bf16.msra.mxu0 0
      %385 = vmatpush.bf16.msra.mxu0 0
      %386 = vmatpush.bf16.msra.mxu0 %v364
      %387 = vmatmul.bf16.gmra.mxu0 %v357
      %v388 = vpop.f32.mrf.mxu0
      %v389 = vadd.f32 0.0, %v388
      %v390 = vpop.f32.mrf.mxu0
      %391 = vdwg.mxu0
      %v393 = vsel %vm355, %v322, 0
      %v396 = vsel %vm359, %v323, 0
      %v399 = vsel %vm359, %v324, 0
      %401 = vmatpush.bf16.msra.mxu0 0
      %402 = vmatpush.bf16.msra.mxu0 0
      %403 = vmatpush.bf16.msra.mxu0 0
      %404 = vmatpush.bf16.msra.mxu0 0
      %405 = vmatpush.bf16.msra.mxu0 0
      %406 = vmatpush.bf16.msra.mxu0 0
      %407 = vmatpush.bf16.msra.mxu0 0
      %408 = vmatpush.bf16.msra.mxu0 %v396
      %409 = vmatmul.bf16.gmra.mxu0 %v393
      %v410 = vpop.f32.mrf.mxu0
      %v411 = vadd.f32 %v376, %v410
      %v412 = vpop.f32.mrf.mxu0
      %413 = vdwg.mxu0
      %414 = vmatpush.bf16.msra.mxu0 0
      %415 = vmatpush.bf16.msra.mxu0 0
      %416 = vmatpush.bf16.msra.mxu0 0
      %417 = vmatpush.bf16.msra.mxu0 0
      %418 = vmatpush.bf16.msra.mxu0 0
      %419 = vmatpush.bf16.msra.mxu0 0
      %420 = vmatpush.bf16.msra.mxu0 0
      %421 = vmatpush.bf16.msra.mxu0 %v399
      %422 = vmatmul.bf16.gmra.mxu0 %v393
      %v423 = vpop.f32.mrf.mxu0
      %v424 = vadd.f32 %v389, %v423
      %v425 = vpop.f32.mrf.mxu0
      %426 = vdwg.mxu0
      %v427 = vld [vmem:[#allocation2] sm:$0xff]
      %v428 = vld [vmem:[#allocation2 + $0x8] sm:$0xf]
      %v429 = vsel %vm307, 1, 0
      %v430 = vsel %vm308, 1, 0
      %vm431 = vcmp.eq.s32.totalorder %v429, 1
      %vm432 = vcmp.eq.s32.totalorder %v430, 1
      %435 = vst [vmem:[#allocation1] ss:$2 sm:$0xff] %v427
      %s436 = scalar_lea.vmem [#allocation1], 16
      %437 = vst [vmem:[%s436] ss:$2 sm:$0xff] %v428
      %v438 = vld.sshfl [vmem:[#allocation1] sm:$0xff pattern:$0x75316420]
      %v439 = vld.sshfl [vmem:[#allocation1 + $0x8] sm:$0xff pattern:$0x75316420]
      %v440 = vld.sshfl [vmem:[#allocation1 + $0x10] sm:$0xff pattern:$0x75316420]
      %441 = vrot.lane.b32.xlu0 %v438, 126
      %v442 = vpop.permute.xlu0 %441
      %443 = vrot.lane.b32.xlu0 %v439, 126
      %v444 = vpop.permute.xlu0 %443
      %445 = vrot.lane.b32.xlu0 %v440, 126
      %v446 = vpop.permute.xlu0 %445
      %vm447 = vcmask 1031168
      %v448 = vsel %vm447, %v442, %v444
      %v449 = vsel %vm447, %v444, %v446
      %v452 = vsel %vm431, %v448, 0.0
      %v453 = vsel %vm432, %v449, 0.0
      %s454 = scalar_lea.vmem %s3, 4
      %v455 = vld [vmem:[%s454] sm:$0x3]
      %v456 = vpack.c.bf16 %v452, %v452
      %v457 = vpack.c.bf16 %v453, %v453
      %v459 = vsel %vm355, %v455, 0
      %v462 = vsel %vm359, %v456, 0
      %v465 = vsel %vm359, %v457, 0
      %467 = vmatpush.bf16.msra.mxu0 0
      %468 = vmatpush.bf16.msra.mxu0 0
      %469 = vmatpush.bf16.msra.mxu0 0
      %470 = vmatpush.bf16.msra.mxu0 0
      %471 = vmatpush.bf16.msra.mxu0 0
      %472 = vmatpush.bf16.msra.mxu0 0
      %473 = vmatpush.bf16.msra.mxu0 0
      %474 = vmatpush.bf16.msra.mxu0 %v462
      %475 = vmatmul.bf16.gmra.mxu0 %v459
      %v476 = vpop.f32.mrf.mxu0
      %v477 = vadd.f32 0.0, %v476
      %v478 = vpop.f32.mrf.mxu0
      %479 = vdwg.mxu0
      %480 = vmatpush.bf16.msra.mxu0 0
      %481 = vmatpush.bf16.msra.mxu0 0
      %482 = vmatpush.bf16.msra.mxu0 0
      %483 = vmatpush.bf16.msra.mxu0 0
      %484 = vmatpush.bf16.msra.mxu0 0
      %485 = vmatpush.bf16.msra.mxu0 0
      %486 = vmatpush.bf16.msra.mxu0 0
      %487 = vmatpush.bf16.msra.mxu0 %v465
      %488 = vmatmul.bf16.gmra.mxu0 %v459
      %v489 = vpop.f32.mrf.mxu0
      %v490 = vadd.f32 0.0, %v489
      %v491 = vpop.f32.mrf.mxu0
      %492 = vdwg.mxu0
      %v493 = vadd.f32 %v411, %v477
      %v494 = vadd.f32 %v424, %v490
      %v495 = vld [vmem:[#allocation2] sm:$0xff]
      %v496 = vld [vmem:[#allocation2 + $0x8] sm:$0xf]
      %499 = vst [vmem:[#allocation1] ss:$2 sm:$0xff] %v495
      %s500 = scalar_lea.vmem [#allocation1], 16
      %501 = vst [vmem:[%s500] ss:$2 sm:$0xff] %v496
      %v502 = vld.sshfl [vmem:[#allocation1] sm:$0xff pattern:$0x75316420]
      %v503 = vld.sshfl [vmem:[#allocation1 + $0x8] sm:$0xff pattern:$0x75316420]
      %v504 = vld.sshfl [vmem:[#allocation1 + $0x10] sm:$0xff pattern:$0x75316420]
      %505 = vrot.lane.b32.xlu0 %v502, 112
      %v506 = vpop.permute.xlu0 %505
      %507 = vrot.lane.b32.xlu0 %v503, 112
      %v508 = vpop.permute.xlu0 %507
      %509 = vrot.lane.b32.xlu0 %v504, 112
      %v510 = vpop.permute.xlu0 %509
      %vm511 = vcmask 916480
      %v512 = vsel %vm511, %v506, %v508
      %v513 = vsel %vm511, %v508, %v510
      %v516 = vsel %vm312, %v512, 0.0
      %v517 = vsel %vm313, %v513, 0.0
      %s518 = scalar_lea.vmem %s3, 6
      %v519 = vld [vmem:[%s518] sm:$0x3]
      %v520 = vpack.c.bf16 %v516, %v516
      %v521 = vpack.c.bf16 %v517, %v517
      %v523 = vsel %vm355, %v519, 0
      %v526 = vsel %vm359, %v520, 0
      %v529 = vsel %vm359, %v521, 0
      %531 = vmatpush.bf16.msra.mxu0 0
      %532 = vmatpush.bf16.msra.mxu0 0
      %533 = vmatpush.bf16.msra.mxu0 0
      %534 = vmatpush.bf16.msra.mxu0 0
      %535 = vmatpush.bf16.msra.mxu0 0
      %536 = vmatpush.bf16.msra.mxu0 0
      %537 = vmatpush.bf16.msra.mxu0 0
      %538 = vmatpush.bf16.msra.mxu0 %v526
      %539 = vmatmul.bf16.gmra.mxu0 %v523
      %v540 = vpop.f32.mrf.mxu0
      %v541 = vadd.f32 0.0, %v540
      %v542 = vpop.f32.mrf.mxu0
      %543 = vdwg.mxu0
      %544 = vmatpush.bf16.msra.mxu0 0
      %545 = vmatpush.bf16.msra.mxu0 0
      %546 = vmatpush.bf16.msra.mxu0 0
      %547 = vmatpush.bf16.msra.mxu0 0
      %548 = vmatpush.bf16.msra.mxu0 0
      %549 = vmatpush.bf16.msra.mxu0 0
      %550 = vmatpush.bf16.msra.mxu0 0
      %551 = vmatpush.bf16.msra.mxu0 %v529
      %552 = vmatmul.bf16.gmra.mxu0 %v523
      %v553 = vpop.f32.mrf.mxu0
      %v554 = vadd.f32 0.0, %v553
      %v555 = vpop.f32.mrf.mxu0
      %556 = vdwg.mxu0
      %v557 = vadd.f32 %v493, %v541
      %v558 = vadd.f32 %v494, %v554
      %v559 = vld [vmem:[#allocation2] sm:$0xff]
      %v560 = vld [vmem:[#allocation2 + $0x8] sm:$0xf]
      %s561 = scalar_lea.vmem %s3, 8
      %v562 = vld [vmem:[%s561] sm:$0x3]
      %565 = vst [vmem:[#allocation1] ss:$2 sm:$0xff] %v559
      %s566 = scalar_lea.vmem [#allocation1], 16
      %567 = vst [vmem:[%s566] ss:$2 sm:$0xff] %v560
      %v568 = vld.sshfl [vmem:[#allocation1] sm:$0xff pattern:$0x75316420]
      %v569 = vld.sshfl [vmem:[#allocation1 + $0x8] sm:$0xff pattern:$0x75316420]
      %v570 = vld.sshfl [vmem:[#allocation1 + $0x10] sm:$0xff pattern:$0x75316420]
      %v574 = vpack.c.bf16 %v568, %v568
      %v575 = vpack.c.bf16 %v569, %v569
      %v576 = vpack.c.bf16 %v570, %v570
      %580 = vrot.lane.b32.xlu0 %v574, 111
      %v581 = vpop.permute.xlu0 %580
      %582 = vrot.lane.b32.xlu0 %v575, 111
      %v583 = vpop.permute.xlu0 %582
      %584 = vrot.lane.b32.xlu0 %v576, 111
      %v585 = vpop.permute.xlu0 %584
      %vm586 = vcmask 908288
      %v587 = vsel %vm586, %v581, %v583
      %v588 = vsel %vm586, %v583, %v585
      %v590 = vsel %vm355, %v562, 0
      %v593 = vsel %vm359, %v587, 0
      %v596 = vsel %vm359, %v588, 0
      %598 = vmatpush.bf16.msra.mxu0 0
      %599 = vmatpush.bf16.msra.mxu0 0
      %600 = vmatpush.bf16.msra.mxu0 0
      %601 = vmatpush.bf16.msra.mxu0 0
      %602 = vmatpush.bf16.msra.mxu0 0
      %603 = vmatpush.bf16.msra.mxu0 0
      %604 = vmatpush.bf16.msra.mxu0 0
      %605 = vmatpush.bf16.msra.mxu0 %v593
      %606 = vmatmul.bf16.gmra.mxu0 %v590
      %v607 = vpop.f32.mrf.mxu0
      %v608 = vadd.f32 0.0, %v607
      %v609 = vpop.f32.mrf.mxu0
      %610 = vdwg.mxu0
      %611 = vmatpush.bf16.msra.mxu0 0
      %612 = vmatpush.bf16.msra.mxu0 0
      %613 = vmatpush.bf16.msra.mxu0 0
      %614 = vmatpush.bf16.msra.mxu0 0
      %615 = vmatpush.bf16.msra.mxu0 0
      %616 = vmatpush.bf16.msra.mxu0 0
      %617 = vmatpush.bf16.msra.mxu0 0
      %618 = vmatpush.bf16.msra.mxu0 %v596
      %619 = vmatmul.bf16.gmra.mxu0 %v590
      %v620 = vpop.f32.mrf.mxu0
      %v621 = vadd.f32 0.0, %v620
      %v622 = vpop.f32.mrf.mxu0
      %623 = vdwg.mxu0
      %v624 = vadd.f32 %v557, %v608
      %v625 = vadd.f32 %v558, %v621
      %v626 = vld [vmem:[#allocation2] sm:$0xff]
      %v627 = vld [vmem:[#allocation2 + $0x8] sm:$0xf]
      %630 = vst [vmem:[#allocation1] ss:$2 sm:$0xff] %v626
      %s631 = scalar_lea.vmem [#allocation1], 16
      %632 = vst [vmem:[%s631] ss:$2 sm:$0xff] %v627
      %v633 = vld.sshfl [vmem:[#allocation1] sm:$0xff pattern:$0x75316420]
      %v634 = vld.sshfl [vmem:[#allocation1 + $0x8] sm:$0xff pattern:$0x75316420]
      %v635 = vld.sshfl [vmem:[#allocation1 + $0x10] sm:$0xff pattern:$0x75316420]
      %636 = vrot.lane.b32.xlu0 %v633, 110
      %v637 = vpop.permute.xlu0 %636
      %638 = vrot.lane.b32.xlu0 %v634, 110
      %v639 = vpop.permute.xlu0 %638
      %640 = vrot.lane.b32.xlu0 %v635, 110
      %v641 = vpop.permute.xlu0 %640
      %vm642 = vcmask 900096
      %v643 = vsel %vm642, %v637, %v639
      %v644 = vsel %vm642, %v639, %v641
      %v647 = vsel %vm431, %v643, 0.0
      %v648 = vsel %vm432, %v644, 0.0
      %s649 = scalar_lea.vmem %s3, 10
      %v650 = vld [vmem:[%s649] sm:$0x3]
      %v651 = vpack.c.bf16 %v647, %v647
      %v652 = vpack.c.bf16 %v648, %v648
      %v654 = vsel %vm355, %v650, 0
      %v657 = vsel %vm359, %v651, 0
      %v660 = vsel %vm359, %v652, 0
      %662 = vmatpush.bf16.msra.mxu0 0
      %663 = vmatpush.bf16.msra.mxu0 0
      %664 = vmatpush.bf16.msra.mxu0 0
      %665 = vmatpush.bf16.msra.mxu0 0
      %666 = vmatpush.bf16.msra.mxu0 0
      %667 = vmatpush.bf16.msra.mxu0 0
      %668 = vmatpush.bf16.msra.mxu0 0
      %669 = vmatpush.bf16.msra.mxu0 %v657
      %670 = vmatmul.bf16.gmra.mxu0 %v654
      %v671 = vpop.f32.mrf.mxu0
      %v672 = vadd.f32 0.0, %v671
      %v673 = vpop.f32.mrf.mxu0
      %674 = vdwg.mxu0
      %675 = vmatpush.bf16.msra.mxu0 0
      %676 = vmatpush.bf16.msra.mxu0 0
      %677 = vmatpush.bf16.msra.mxu0 0
      %678 = vmatpush.bf16.msra.mxu0 0
      %679 = vmatpush.bf16.msra.mxu0 0
      %680 = vmatpush.bf16.msra.mxu0 0
      %681 = vmatpush.bf16.msra.mxu0 0
      %682 = vmatpush.bf16.msra.mxu0 %v660
      %683 = vmatmul.bf16.gmra.mxu0 %v654
      %v684 = vpop.f32.mrf.mxu0
      %v685 = vadd.f32 0.0, %v684
      %v686 = vpop.f32.mrf.mxu0
      %687 = vdwg.mxu0
      %v688 = vadd.f32 %v624, %v672
      %v689 = vadd.f32 %v625, %v685
      %v690 = vld [vmem:[#allocation2] sm:$0xff]
      %v691 = vld [vmem:[#allocation2 + $0x8] sm:$0xf]
      %694 = vst [vmem:[#allocation1] ss:$2 sm:$0xff] %v690
      %s695 = scalar_lea.vmem [#allocation1], 16
      %696 = vst [vmem:[%s695] ss:$2 sm:$0xff] %v691
      %v697 = vld.sshfl [vmem:[#allocation1] sm:$0xff pattern:$0x75316420]
      %v698 = vld.sshfl [vmem:[#allocation1 + $0x8] sm:$0xff pattern:$0x75316420]
      %v699 = vld.sshfl [vmem:[#allocation1 + $0x10] sm:$0xff pattern:$0x75316420]
      %700 = vrot.lane.b32.xlu0 %v697, 96
      %v701 = vpop.permute.xlu0 %700
      %702 = vrot.lane.b32.xlu0 %v698, 96
      %v703 = vpop.permute.xlu0 %702
      %704 = vrot.lane.b32.xlu0 %v699, 96
      %v705 = vpop.permute.xlu0 %704
      %vm706 = vcmask 785408
      %v707 = vsel %vm706, %v701, %v703
      %v708 = vsel %vm706, %v703, %v705
      %v711 = vsel %vm312, %v707, 0.0
      %v712 = vsel %vm313, %v708, 0.0
      %s713 = scalar_lea.vmem %s3, 12
      %v714 = vld [vmem:[%s713] sm:$0x3]
      %v715 = vpack.c.bf16 %v711, %v711
      %v716 = vpack.c.bf16 %v712, %v712
      %v718 = vsel %vm355, %v714, 0
      %v721 = vsel %vm359, %v715, 0
      %v724 = vsel %vm359, %v716, 0
      %726 = vmatpush.bf16.msra.mxu0 0
      %727 = vmatpush.bf16.msra.mxu0 0
      %728 = vmatpush.bf16.msra.mxu0 0
      %729 = vmatpush.bf16.msra.mxu0 0
      %730 = vmatpush.bf16.msra.mxu0 0
      %731 = vmatpush.bf16.msra.mxu0 0
      %732 = vmatpush.bf16.msra.mxu0 0
      %733 = vmatpush.bf16.msra.mxu0 %v721
      %734 = vmatmul.bf16.gmra.mxu0 %v718
      %v735 = vpop.f32.mrf.mxu0
      %v736 = vadd.f32 0.0, %v735
      %v737 = vpop.f32.mrf.mxu0
      %738 = vdwg.mxu0
      %739 = vmatpush.bf16.msra.mxu0 0
      %740 = vmatpush.bf16.msra.mxu0 0
      %741 = vmatpush.bf16.msra.mxu0 0
      %742 = vmatpush.bf16.msra.mxu0 0
      %743 = vmatpush.bf16.msra.mxu0 0
      %744 = vmatpush.bf16.msra.mxu0 0
      %745 = vmatpush.bf16.msra.mxu0 0
      %746 = vmatpush.bf16.msra.mxu0 %v724
      %747 = vmatmul.bf16.gmra.mxu0 %v718
      %v748 = vpop.f32.mrf.mxu0
      %v749 = vadd.f32 0.0, %v748
      %v750 = vpop.f32.mrf.mxu0
      %751 = vdwg.mxu0
      %v752 = vadd.f32 %v688, %v736
      %v753 = vadd.f32 %v689, %v749
      %v754 = vld [vmem:[#allocation2] sm:$0xff]
      %v755 = vld [vmem:[#allocation2 + $0x8] sm:$0xf]
      %s756 = scalar_lea.vmem %s3, 14
      %v757 = vld [vmem:[%s756] sm:$0x3]
      %760 = vst [vmem:[#allocation1] ss:$2 sm:$0xff] %v754
      %s761 = scalar_lea.vmem [#allocation1], 16
      %762 = vst [vmem:[%s761] ss:$2 sm:$0xff] %v755
      %v763 = vld.sshfl [vmem:[#allocation1] sm:$0xff pattern:$0x75316420]
      %v764 = vld.sshfl [vmem:[#allocation1 + $0x8] sm:$0xff pattern:$0x75316420]
      %v765 = vld.sshfl [vmem:[#allocation1 + $0x10] sm:$0xff pattern:$0x75316420]
      %v769 = vpack.c.bf16 %v763, %v763
      %v770 = vpack.c.bf16 %v764, %v764
      %v771 = vpack.c.bf16 %v765, %v765
      %775 = vrot.lane.b32.xlu0 %v769, 95
      %v776 = vpop.permute.xlu0 %775
      %777 = vrot.lane.b32.xlu0 %v770, 95
      %v778 = vpop.permute.xlu0 %777
      %779 = vrot.lane.b32.xlu0 %v771, 95
      %v780 = vpop.permute.xlu0 %779
      %vm781 = vcmask 777216
      %v782 = vsel %vm781, %v776, %v778
      %v783 = vsel %vm781, %v778, %v780
      %v785 = vsel %vm355, %v757, 0
      %v788 = vsel %vm359, %v782, 0
      %v791 = vsel %vm359, %v783, 0
      %793 = vmatpush.bf16.msra.mxu0 0
      %794 = vmatpush.bf16.msra.mxu0 0
      %795 = vmatpush.bf16.msra.mxu0 0
      %796 = vmatpush.bf16.msra.mxu0 0
      %797 = vmatpush.bf16.msra.mxu0 0
      %798 = vmatpush.bf16.msra.mxu0 0
      %799 = vmatpush.bf16.msra.mxu0 0
      %800 = vmatpush.bf16.msra.mxu0 %v788
      %801 = vmatmul.bf16.gmra.mxu0 %v785
      %v802 = vpop.f32.mrf.mxu0
      %v803 = vadd.f32 0.0, %v802
      %v804 = vpop.f32.mrf.mxu0
      %805 = vdwg.mxu0
      %806 = vmatpush.bf16.msra.mxu0 0
      %807 = vmatpush.bf16.msra.mxu0 0
      %808 = vmatpush.bf16.msra.mxu0 0
      %809 = vmatpush.bf16.msra.mxu0 0
      %810 = vmatpush.bf16.msra.mxu0 0
      %811 = vmatpush.bf16.msra.mxu0 0
      %812 = vmatpush.bf16.msra.mxu0 0
      %813 = vmatpush.bf16.msra.mxu0 %v791
      %814 = vmatmul.bf16.gmra.mxu0 %v785
      %v815 = vpop.f32.mrf.mxu0
      %v816 = vadd.f32 0.0, %v815
      %v817 = vpop.f32.mrf.mxu0
      %818 = vdwg.mxu0
      %v819 = vadd.f32 %v752, %v803
      %v820 = vadd.f32 %v753, %v816
      %v821 = vld [vmem:[#allocation2] sm:$0xff]
      %v822 = vld [vmem:[#allocation2 + $0x8] sm:$0xf]
      %825 = vst [vmem:[#allocation1] ss:$2 sm:$0xff] %v821
      %s826 = scalar_lea.vmem [#allocation1], 16
      %827 = vst [vmem:[%s826] ss:$2 sm:$0xff] %v822
      %v828 = vld.sshfl [vmem:[#allocation1] sm:$0xff pattern:$0x75316420]
      %v829 = vld.sshfl [vmem:[#allocation1 + $0x8] sm:$0xff pattern:$0x75316420]
      %v830 = vld.sshfl [vmem:[#allocation1 + $0x10] sm:$0xff pattern:$0x75316420]
      %831 = vrot.lane.b32.xlu0 %v828, 94
      %v832 = vpop.permute.xlu0 %831
      %833 = vrot.lane.b32.xlu0 %v829, 94
      %v834 = vpop.permute.xlu0 %833
      %835 = vrot.lane.b32.xlu0 %v830, 94
      %v836 = vpop.permute.xlu0 %835
      %vm837 = vcmask 769024
      %v838 = vsel %vm837, %v832, %v834
      %v839 = vsel %vm837, %v834, %v836
      %v842 = vsel %vm431, %v838, 0.0
      %v843 = vsel %vm432, %v839, 0.0
      %s844 = scalar_lea.vmem %s3, 16
      %v845 = vld [vmem:[%s844] sm:$0x3]
      %v846 = vpack.c.bf16 %v842, %v842
      %v847 = vpack.c.bf16 %v843, %v843
      %v849 = vsel %vm355, %v845, 0
      %v852 = vsel %vm359, %v846, 0
      %v855 = vsel %vm359, %v847, 0
      %857 = vmatpush.bf16.msra.mxu0 0
      %858 = vmatpush.bf16.msra.mxu0 0
      %859 = vmatpush.bf16.msra.mxu0 0
      %860 = vmatpush.bf16.msra.mxu0 0
      %861 = vmatpush.bf16.msra.mxu0 0
      %862 = vmatpush.bf16.msra.mxu0 0
      %863 = vmatpush.bf16.msra.mxu0 0
      %864 = vmatpush.bf16.msra.mxu0 %v852
      %865 = vmatmul.bf16.gmra.mxu0 %v849
      %v866 = vpop.f32.mrf.mxu0
      %v867 = vadd.f32 0.0, %v866
      %v868 = vpop.f32.mrf.mxu0
      %869 = vdwg.mxu0
      %870 = vmatpush.bf16.msra.mxu0 0
      %871 = vmatpush.bf16.msra.mxu0 0
      %872 = vmatpush.bf16.msra.mxu0 0
      %873 = vmatpush.bf16.msra.mxu0 0
      %874 = vmatpush.bf16.msra.mxu0 0
      %875 = vmatpush.bf16.msra.mxu0 0
      %876 = vmatpush.bf16.msra.mxu0 0
      %877 = vmatpush.bf16.msra.mxu0 %v855
      %878 = vmatmul.bf16.gmra.mxu0 %v849
      %v879 = vpop.f32.mrf.mxu0
      %v880 = vadd.f32 0.0, %v879
      %v881 = vpop.f32.mrf.mxu0
      %882 = vdwg.mxu0
      %v883 = vadd.f32 %v819, %v867
      %v884 = vadd.f32 %v820, %v880
      %v887 = vrot.slane %v884, 4
      %vm888 = vcmask 1043456
      %v889 = vsel %vm888, %v883, %v887
      %891 = vst [vmem:[%s231] sm:$0xff] %v889
      %v892 = vsel %vm888, %v883, 0.0
      %v893 = vsel %vm888, %v884, 0.0
      %v894 = vadd.f32 %v892, %v893
      %895 = vadd.xlane.f32.xlu0 %v894
      %v896 = vpop.xlane.xlu0 %895
      %v897 = vmul.f32 %v883, %v883
      %v898 = vmul.f32 %v884, %v884
      %v899 = vsel %vm888, %v897, 0.0
      %v900 = vsel %vm888, %v898, 0.0
      %v901 = vadd.f32 %v899, %v900
      %902 = vadd.xlane.f32.xlu0 %v901
      %v903 = vpop.xlane.xlu0 %902
      %vm904 = vcmask 7168
      %v905 = vsel %vm904, %v896, %v903
      %vm906 = vcmask 11264
      %907 = vst.msk [vmem:[%s235] sm:$0xf] %vm906, %v905
      %p908 = scmp.lt.s32.totalorder %s17, 1
      %s909 = scalar_select %p908, %s17, 1
      %s910 = smul.addr %s909, 2
      %s911 = smul.addr %s910, 4
      %s912 = scalar_lea.vmem %s4, %s911
      %p913 = scmp.lt.s32.totalorder %s17, 1
      %s914 = scalar_select %p913, %s17, 1
      %s915 = smul.addr %s914, 4
      %s916 = scalar_lea.vmem %s5, %s915
      // Predicated region
      $region37: #{basic_block_forward.4} parent=35 // pred_check
        %p917 = pneg %p124
      $region38: #{basic_block_forward.4} parent=35 // pred_check_branch
        %919 = sbr.rel (%p917) target = $region40
      $region39: #{basic_block_forward.4} parent=35 // pred_region
        _
      $region40: #{basic_block_forward.4} parent=35 // pred_fallthru
        _
      // Predicated region
      $region41: #{basic_block_forward.4} parent=35 // pred_check
        %p920 = pneg %p150
      $region42: #{basic_block_forward.4} parent=35 // pred_check_branch
        %922 = sbr.rel (%p920) target = $region44
      $region43: #{basic_block_forward.4} parent=35 // pred_region
        _
      $region44: #{basic_block_forward.4} parent=35 // pred_fallthru
        _
    $region36: #{basic_block_forward.4} parent=5 // pred_fallthru
      _
    %p923 = scmp.le.s32.totalorder 2, %s12
    // Predicated region
    $region45: #{basic_block_forward.4} parent=5 // pred_check
      %p924 = pneg %p923
    $region46: #{basic_block_forward.4} parent=5 // pred_check_branch
      %926 = sbr.rel (%p924) target = $region48
    $region47: #{basic_block_forward.4} parent=5 // pred_region
      %s927 = ssub.s32 %s12, 2
      // Predicated region
      $region49: #{basic_block_forward.4} parent=47 // pred_check
        %p928 = pneg %p130
      $region50: #{basic_block_forward.4} parent=47 // pred_check_branch
        %930 = sbr.rel (%p928) target = $region52
      $region51: #{basic_block_forward.4} parent=47 // pred_region
        %p931 = scmp.lt.s32.totalorder %s18, 1
        %s932 = scalar_select %p931, %s18, 1
        %s933 = smul.addr %s932, 2
        %s934 = smul.addr %s933, 4
        %s935 = scalar_lea.vmem %s4, %s934
      $region52: #{basic_block_forward.4} parent=47 // pred_fallthru
        _
      // Predicated region
      $region53: #{basic_block_forward.4} parent=47 // pred_check
        %p936 = pneg %p156
      $region54: #{basic_block_forward.4} parent=47 // pred_check_branch
        %938 = sbr.rel (%p936) target = $region56
      $region55: #{basic_block_forward.4} parent=47 // pred_region
        %p939 = scmp.lt.s32.totalorder %s18, 1
        %s940 = scalar_select %p939, %s18, 1
        %s941 = smul.addr %s940, 4
        %s942 = scalar_lea.vmem %s5, %s941
      $region56: #{basic_block_forward.4} parent=47 // pred_fallthru
        _
    $region48: #{basic_block_forward.4} parent=5 // pred_fallthru
      _
  $region6: #{basic_block_forward.4} parent=0 // loop_footer
    %s16 = sadd.s32 1, %s12
  $region7: #{basic_block_forward.4} parent=0 // loop_footer_branch
    %11 = sbr.rel target = $region3
  $region8: #{basic_block_forward.4} parent=0 // loop_exit
    _

</llo_original>
